<compile_context>
chip_gen: v5e
topology: v5e:2x2
jax: 0.10.0
libtpu: 0.0.40
codegen_flags: <defaults>
</compile_context>

<pallas_src>
import jax
import jax.numpy as jnp
from jax.experimental import pallas as pl
from jax.experimental.pallas import tpu as pltpu


# ----------------------------------------------------------------------------
# Fused forward kernel.
# ----------------------------------------------------------------------------
def netwidth_kernel(x_ref, t1_ref, b1_ref, t2_ref, b2_ref,
                    w3_ref, b3_ref, w4_ref, b4_ref, o_ref):
    bt, H, W = x_ref.shape
    WC1 = t1_ref.shape[-1]            # W * C1  (conv1 output lane width)
    C1 = WC1 // W
    H2, W2 = H // 2, W // 2
    KW2 = t2_ref.shape[1]             # W*C1 - C1 (pooled stage-1 lane width)
    WC2 = t2_ref.shape[-1]            # W2 * C2 (conv2 output lane width)
    C2 = WC2 // W2
    H4 = H2 // 2

    # ---- conv1: 3 x-Toeplitz matmuls (one per kernel row dy) ---------------
    # x padding in the W direction is folded into t1; the two zero border
    # rows in H are register concats (no scratch, no memset).
    xb = x_ref[...].astype(jnp.bfloat16)                       # (bt, H, W)
    zrow = jnp.zeros((bt, 1, W), jnp.bfloat16)
    xp = jnp.concatenate([zrow, xb, zrow], axis=1)             # (bt, H+2, W)

    lhs = xp[:, 0:H, :].reshape(bt * H, W)
    acc1 = jnp.dot(lhs, t1_ref[0], preferred_element_type=jnp.float32)
    for dy in (1, 2):
        lhs = xp[:, dy:dy + H, :].reshape(bt * H, W)
        acc1 += jnp.dot(lhs, t1_ref[dy], preferred_element_type=jnp.float32)
    # acc1: (bt*H, W*C1), lane = x*C1 + c

    # ---- pool1 (2x2 max) -> bias -> tanh  (bias/tanh commute with max) -----
    a = acc1.reshape(bt, H2, 2, WC1)
    a = jnp.maximum(a[:, :, 0, :], a[:, :, 1, :])              # H pairs
    a = jnp.maximum(a[:, :, :WC1 - C1], a[:, :, C1:])          # W pairs (lanes)
    # meaningful lanes are now l = xp*(2*C1)+c ; others are finite "garbage"
    # that hits all-zero rows in t2 below.
    h = jnp.tanh(a + b1_ref[...]).astype(jnp.bfloat16)         # (bt, H2, KW2)

    # ---- conv2: 3 x-Toeplitz matmuls over the pooled lanes ------------------
    zrow2 = jnp.zeros((bt, 1, KW2), jnp.bfloat16)
    hp = jnp.concatenate([zrow2, h, zrow2], axis=1)            # (bt, H2+2, KW2)

    lhs = hp[:, 0:H2, :].reshape(bt * H2, KW2)
    acc2 = jnp.dot(lhs, t2_ref[0], preferred_element_type=jnp.float32)
    for dy in (1, 2):
        lhs = hp[:, dy:dy + H2, :].reshape(bt * H2, KW2)
        acc2 += jnp.dot(lhs, t2_ref[dy], preferred_element_type=jnp.float32)
    # acc2: (bt*H2, W2*C2), lane = x*C2 + c  (lane-dense, 128 wide)

    # ---- pool2 -> bias -> tanh ----------------------------------------------
    g = acc2.reshape(bt, H4, 2, WC2)
    g = jnp.maximum(g[:, :, 0, :], g[:, :, 1, :])
    g = jnp.maximum(g[:, :, :WC2 - C2], g[:, :, C2:])          # (bt, H4, KW3)
    g = jnp.tanh(g + b2_ref[...])

    # ---- fc1: flatten (NCHW view order) is folded into w3 at init ----------
    z = jnp.dot(g[:, 0, :], w3_ref[0], preferred_element_type=jnp.float32)
    for y in range(1, H4):
        z += jnp.dot(g[:, y, :], w3_ref[y], preferred_element_type=jnp.float32)
    z = jnp.tanh(z + b3_ref[...])

    # ---- fc2: lane-dense 128-wide padded output -----------------------------
    o_ref[...] = jnp.dot(z, w4_ref[...],
                         preferred_element_type=jnp.float32) + b4_ref[...]


# ----------------------------------------------------------------------------
# Wrapper: one pallas_call, grid over the batch dimension only.
# ----------------------------------------------------------------------------
def _pick_batch_tile(B, cap=64):
    """Largest multiple-of-8 divisor of B (<= cap), preferring >= 2 grid
    steps so the "parallel" batch axis can be split across TensorCores."""
    if B <= 8:
        return B
    divs = [t for t in range(8, min(cap, B) + 1, 8) if B % t == 0]
    if not divs:
        return B
    two_step = [t for t in divs if B // t >= 2]
    return max(two_step) if two_step else max(divs)


def netwidth_forward(params, x_nchw, *, batch_tile=None, num_classes=10):
    B, Cin, H, W = x_nchw.shape
    assert Cin == 1, "NetWidth's conv1 expects a single input channel"
    assert H % 4 == 0 and W % 4 == 0
    x = x_nchw.reshape(B, H, W).astype(jnp.float32)   # drop the Cin=1 dim

    t1, b1 = params["t1"], params["b1"]
    t2, b2 = params["t2"], params["b2"]
    w3, b3 = params["w3"], params["b3"]
    w4, b4 = params["w4"], params["b4"]
    n_pad = w4.shape[-1]                              # 128 padded logits

    if batch_tile is None:
        batch_tile = _pick_batch_tile(B)
    assert B % batch_tile == 0
    assert batch_tile % 8 == 0 or batch_tile == B     # output-block alignment
    grid = (B // batch_tile,)

    def _full(a):
        nd = a.ndim
        return pl.BlockSpec(a.shape, lambda b, _nd=nd: (0,) * _nd)

    flops = 2 * B * (3 * H * W * t1.shape[-1]
                     + 3 * (H // 2) * t2.shape[1] * t2.shape[-1]
                     + (H // 4) * w3.shape[1] * w3.shape[-1]
                     + w4.shape[0] * w4.shape[-1])
    transcendentals = B * ((H // 2) * t2.shape[1]
                           + (H // 4) * w3.shape[1] + w3.shape[-1])
    bytes_accessed = (4 * x.size + 4 * B * n_pad
                      + sum(int(a.size) * a.dtype.itemsize
                            for a in (t1, b1, t2, b2, w3, b3, w4, b4)))

    out = pl.pallas_call(
        netwidth_kernel,
        out_shape=jax.ShapeDtypeStruct((B, n_pad), jnp.float32),
        grid_spec=pltpu.PrefetchScalarGridSpec(
            num_scalar_prefetch=0,
            grid=grid,
            in_specs=[
                pl.BlockSpec((batch_tile, H, W), lambda b: (b, 0, 0)),
                _full(t1), _full(b1), _full(t2), _full(b2),
                _full(w3), _full(b3), _full(w4), _full(b4),
            ],
            out_specs=pl.BlockSpec((batch_tile, n_pad), lambda b: (b, 0)),
        ),
        compiler_params=pltpu.CompilerParams(
            dimension_semantics=("parallel",),        # safe: no cross-step state
            vmem_limit_bytes=48 * 1024 * 1024,
        ),
        cost_estimate=pl.CostEstimate(
            flops=flops, transcendentals=transcendentals,
            bytes_accessed=bytes_accessed),
    )(x, t1, b1, t2, b2, w3, b3, w4, b4)
    return out[:, :num_classes]


# ----------------------------------------------------------------------------
# Parameters: PyTorch-style uniform fan-in init, pre-transformed once into the
# kernel layouts (x-Toeplitz conv matrices with SAME x-padding and the pooled
# lane stride baked in, pooled-lane biases, NHWC/lane-permuted fc1, 128-column
# padded fc2).  Raw weights are also returned for the pure-JAX reference.
# ----------------------------------------------------------------------------
def init_params(key, height, width, n_chans1=32):
    C1, C2 = n_chans1, n_chans1 // 2
    H, W = height, width
    H2, W2, H4, W4 = H // 2, W // 2, H // 4, W // 4
    fc1_in, nf1, n_out, n_pad = H4 * W4 * C2, 32, 10, 128
    ks = jax.random.split(key, 8)

    def u(k, shape, fan_in):
        bound = 1.0 / float(fan_in) ** 0.5
        return jax.random.uniform(k, shape, jnp.float32, -bound, bound)

    raw = dict(
        w1=u(ks[0], (3, 3, C1), 9),            # [dy, dx, cout]   (Cin == 1)
        b1=u(ks[1], (C1,), 9),
        w2=u(ks[2], (3, 3, C1, C2), 9 * C1),   # [dy, dx, cin, cout]
        b2=u(ks[3], (C2,), 9 * C1),
        w3=u(ks[4], (fc1_in, nf1), fc1_in),    # rows in torch view order c*H4*W4+y*W4+x
        b3=u(ks[5], (nf1,), fc1_in),
        w4=u(ks[6], (nf1, n_out), nf1),
        b4=u(ks[7], (n_out,), nf1),
    )

    # conv1 x-Toeplitz: t1[dy, u, x*C1+c] = w1[dy, u-x+1, c]; out-of-range taps
    # (SAME x-padding) simply have no entry.
    t1 = jnp.zeros((3, W, W * C1), jnp.float32)
    for dx in range(3):
        for x in range(W):
            u_in = x + dx - 1
            if 0 <= u_in < W:
                t1 = t1.at[:, u_in, x * C1:(x + 1) * C1].set(raw["w1"][:, dx, :])

    # conv2 x-Toeplitz over pooled stage-1 lanes (layout l = xp*(2*C1)+ci).
    # The uncompacted "garbage" pool lanes get all-zero rows.
    KW2 = W * C1 - C1
    t2 = jnp.zeros((3, W * C1, W2 * C2), jnp.float32)
    for dx in range(3):
        for x2 in range(W2):
            xp_in = x2 + dx - 1
            if 0 <= xp_in < W2:
                t2 = t2.at[:, xp_in * 2 * C1: xp_in * 2 * C1 + C1,
                           x2 * C2:(x2 + 1) * C2].set(raw["w2"][:, dx, :, :])
    t2 = t2[:, :KW2, :]

    # fc1: fold PyTorch's NCHW view(B,-1) order into the weights and scatter
    # the rows onto the pooled stage-2 lane layout l = xq*(2*C2)+c.
    KW3 = W2 * C2 - C2
    w3r = raw["w3"].reshape(C2, H4, W4, nf1).transpose(1, 2, 0, 3)  # (H4,W4,C2,nf1)
    w3p = jnp.concatenate(
        [w3r, jnp.zeros((H4, W4, C2, nf1), jnp.float32)], axis=2)
    w3k = w3p.reshape(H4, W4 * 2 * C2, nf1)[:, :KW3, :]             # (H4,KW3,nf1)

    # fc2 padded to a lane-dense 128-wide output (sliced to 10 outside).
    w4p = jnp.zeros((nf1, n_pad), jnp.float32).at[:, :n_out].set(raw["w4"])
    b4p = jnp.zeros((1, n_pad), jnp.float32).at[0, :n_out].set(raw["b4"])

    kernel_params = dict(
        t1=t1.astype(jnp.bfloat16),
        b1=jnp.tile(raw["b1"], W)[:KW2].reshape(1, KW2),
        t2=t2.astype(jnp.bfloat16),
        b2=jnp.tile(raw["b2"], W2)[:KW3].reshape(1, KW3),
        w3=w3k, b3=raw["b3"].reshape(1, nf1),
        w4=w4p, b4=b4p,
    )
    return kernel_params, raw


# ----------------------------------------------------------------------------
# Pure-JAX reference (same bf16 rounding points as the kernel) for a sanity
# check; runs as plain XLA outside the kernel.
# ----------------------------------------------------------------------------
def reference_forward(raw, x_nchw):
    f32, bf16 = jnp.float32, jnp.bfloat16
    B, _, H, W = x_nchw.shape
    C1 = raw["w1"].shape[-1]

    def conv3x3(inp, w, b):           # inp NHWC, w (3,3,Cin,Cout), SAME pad
        wq = w.astype(bf16).astype(f32)
        n, h, ww, _ = inp.shape
        pad = jnp.pad(inp, ((0, 0), (1, 1), (1, 1), (0, 0)))
        out = jnp.zeros((n, h, ww, w.shape[-1]), f32)
        for dy in range(3):
            for dx in range(3):
                out = out + jnp.einsum('nhwc,cf->nhwf',
                                       pad[:, dy:dy + h, dx:dx + ww, :],
                                       wq[dy, dx])
        return out + b[None, None, None, :]

    def pool2x2(t):
        n, h, ww, c = t.shape
        return jnp.max(t.reshape(n, h // 2, 2, ww // 2, 2, c), axis=(2, 4))

    x = x_nchw.reshape(B, H, W, 1).astype(bf16).astype(f32)
    h1 = pool2x2(jnp.tanh(conv3x3(x, raw["w1"].reshape(3, 3, 1, C1), raw["b1"])))
    h1 = h1.astype(bf16).astype(f32)          # kernel feeds conv2 bf16 acts
    h2 = pool2x2(jnp.tanh(conv3x3(h1, raw["w2"], raw["b2"])))
    flat = h2.transpose(0, 3, 1, 2).reshape(B, -1)   # PyTorch NCHW view order
    z = jnp.tanh(flat @ raw["w3"] + raw["b3"])
    return z @ raw["w4"] + raw["b4"]


if __name__ == "__main__":
    key = jax.random.PRNGKey(0)
    kx, kp = jax.random.split(key)
    B, H, W = 2, 16, 16
    x = jax.random.normal(kx, (B, 1, H, W), jnp.float32)   # NCHW, 1 channel
    kparams, raw = init_params(kp, H, W, n_chans1=32)

    y = jax.jit(netwidth_forward)(kparams, x)
    y = jax.block_until_ready(y)
    assert y.shape == (B, 10) and y.dtype == jnp.float32

    y_ref = reference_forward(raw, x)
    err = float(jnp.max(jnp.abs(y - y_ref)))
    assert err < 5e-2, f"kernel deviates from reference: max |diff| = {err}"
    print("KERNEL_OK")
</pallas_src>

<mosaic_0001>
module attributes {stable_mosaic.version = 11 : i64} {
  func.func @netwidth_kernel(%arg0: i32, %arg1: memref<2x16x16xf32, #tpu.memory_space<vmem>>, %arg2: memref<3x16x512xbf16, #tpu.memory_space<vmem>>, %arg3: memref<1x480xf32, #tpu.memory_space<vmem>>, %arg4: memref<3x480x128xbf16, #tpu.memory_space<vmem>>, %arg5: memref<1x112xf32, #tpu.memory_space<vmem>>, %arg6: memref<4x112x32xf32, #tpu.memory_space<vmem>>, %arg7: memref<1x32xf32, #tpu.memory_space<vmem>>, %arg8: memref<32x128xf32, #tpu.memory_space<vmem>>, %arg9: memref<1x128xf32, #tpu.memory_space<vmem>>, %arg10: memref<2x128xf32, #tpu.memory_space<vmem>>) attributes {dimension_semantics = [#tpu.dimension_semantics<parallel>], iteration_bounds = array<i64: 1>, scalar_prefetch = 0 : i64, scratch_operands = 0 : i64, tpu.core_type = #tpu.core_type<tc>, window_params = [{transform_indices = @transform_0, window_bounds = array<i64: 2, 16, 16>}, {pipeline_mode = #tpu.pipeline_mode<synchronous>, transform_indices = @transform_1, window_bounds = array<i64: 3, 16, 512>}, {pipeline_mode = #tpu.pipeline_mode<synchronous>, transform_indices = @transform_2, window_bounds = array<i64: 1, 480>}, {pipeline_mode = #tpu.pipeline_mode<synchronous>, transform_indices = @transform_3, window_bounds = array<i64: 3, 480, 128>}, {pipeline_mode = #tpu.pipeline_mode<synchronous>, transform_indices = @transform_4, window_bounds = array<i64: 1, 112>}, {pipeline_mode = #tpu.pipeline_mode<synchronous>, transform_indices = @transform_5, window_bounds = array<i64: 4, 112, 32>}, {pipeline_mode = #tpu.pipeline_mode<synchronous>, transform_indices = @transform_6, window_bounds = array<i64: 1, 32>}, {pipeline_mode = #tpu.pipeline_mode<synchronous>, transform_indices = @transform_7, window_bounds = array<i64: 32, 128>}, {pipeline_mode = #tpu.pipeline_mode<synchronous>, transform_indices = @transform_8, window_bounds = array<i64: 1, 128>}, {transform_indices = @transform_9, window_bounds = array<i64: 2, 128>}]} {
    %c0 = arith.constant 0 : index
    %c0_0 = arith.constant 0 : index
    %c0_1 = arith.constant 0 : index
    %0 = vector.load %arg1[%c0, %c0_0, %c0_1] : memref<2x16x16xf32, #tpu.memory_space<vmem>>, vector<2x16x16xf32>
    %1 = arith.truncf %0 : vector<2x16x16xf32> to vector<2x16x16xbf16>
    %cst = arith.constant 0.000000e+00 : bf16
    %2 = vector.broadcast %cst : bf16 to vector<2x1x16xbf16>
    %3 = tpu.concatenate %2, %1, %2 in 1 : vector<2x1x16xbf16>, vector<2x16x16xbf16>, vector<2x1x16xbf16> -> vector<2x18x16xbf16>
    %4 = vector.extract_strided_slice %3 {offsets = [0, 0, 0], sizes = [2, 16, 16], strides = [1, 1, 1]} : vector<2x18x16xbf16> to vector<2x16x16xbf16>
    %5 = vector.shape_cast %4 : vector<2x16x16xbf16> to vector<32x16xbf16>
    %c0_2 = arith.constant 0 : index
    %c0_3 = arith.constant 0 : index
    %c0_4 = arith.constant 0 : index
    %6 = vector.load %arg2[%c0_2, %c0_3, %c0_4] : memref<3x16x512xbf16, #tpu.memory_space<vmem>>, vector<1x16x512xbf16>
    %7 = vector.shape_cast %6 : vector<1x16x512xbf16> to vector<16x512xbf16>
    %cst_5 = arith.constant dense<0.000000e+00> : vector<32x512xf32>
    %8 = tpu.matmul %5, %7, %cst_5 {dimension_numbers = #tpu.dot_dimension_numbers<[1], [0], [0], [1], [0, 0, 1, 1], [], []>} : vector<32x16xbf16>, vector<16x512xbf16>, vector<32x512xf32> -> vector<32x512xf32>
    %9 = vector.extract_strided_slice %3 {offsets = [0, 1, 0], sizes = [2, 16, 16], strides = [1, 1, 1]} : vector<2x18x16xbf16> to vector<2x16x16xbf16>
    %10 = vector.shape_cast %9 : vector<2x16x16xbf16> to vector<32x16xbf16>
    %c1 = arith.constant 1 : index
    %c0_6 = arith.constant 0 : index
    %c0_7 = arith.constant 0 : index
    %11 = vector.load %arg2[%c1, %c0_6, %c0_7] : memref<3x16x512xbf16, #tpu.memory_space<vmem>>, vector<1x16x512xbf16>
    %12 = vector.shape_cast %11 : vector<1x16x512xbf16> to vector<16x512xbf16>
    %cst_8 = arith.constant dense<0.000000e+00> : vector<32x512xf32>
    %13 = tpu.matmul %10, %12, %cst_8 {dimension_numbers = #tpu.dot_dimension_numbers<[1], [0], [0], [1], [0, 0, 1, 1], [], []>} : vector<32x16xbf16>, vector<16x512xbf16>, vector<32x512xf32> -> vector<32x512xf32>
    %14 = arith.addf %8, %13 : vector<32x512xf32>
    %15 = vector.extract_strided_slice %3 {offsets = [0, 2, 0], sizes = [2, 16, 16], strides = [1, 1, 1]} : vector<2x18x16xbf16> to vector<2x16x16xbf16>
    %16 = vector.shape_cast %15 : vector<2x16x16xbf16> to vector<32x16xbf16>
    %c2 = arith.constant 2 : index
    %c0_9 = arith.constant 0 : index
    %c0_10 = arith.constant 0 : index
    %17 = vector.load %arg2[%c2, %c0_9, %c0_10] : memref<3x16x512xbf16, #tpu.memory_space<vmem>>, vector<1x16x512xbf16>
    %18 = vector.shape_cast %17 : vector<1x16x512xbf16> to vector<16x512xbf16>
    %cst_11 = arith.constant dense<0.000000e+00> : vector<32x512xf32>
    %19 = tpu.matmul %16, %18, %cst_11 {dimension_numbers = #tpu.dot_dimension_numbers<[1], [0], [0], [1], [0, 0, 1, 1], [], []>} : vector<32x16xbf16>, vector<16x512xbf16>, vector<32x512xf32> -> vector<32x512xf32>
    %20 = arith.addf %14, %19 : vector<32x512xf32>
    %21 = vector.shape_cast %20 : vector<32x512xf32> to vector<2x8x2x512xf32>
    %22 = vector.extract_strided_slice %21 {offsets = [0, 0, 0, 0], sizes = [2, 8, 1, 512], strides = [1, 1, 1, 1]} : vector<2x8x2x512xf32> to vector<2x8x1x512xf32>
    %23 = vector.shape_cast %22 : vector<2x8x1x512xf32> to vector<2x8x512xf32>
    %24 = vector.extract_strided_slice %21 {offsets = [0, 0, 1, 0], sizes = [2, 8, 1, 512], strides = [1, 1, 1, 1]} : vector<2x8x2x512xf32> to vector<2x8x1x512xf32>
    %25 = vector.shape_cast %24 : vector<2x8x1x512xf32> to vector<2x8x512xf32>
    %26 = arith.maximumf %23, %25 : vector<2x8x512xf32>
    %27 = vector.extract_strided_slice %26 {offsets = [0, 0, 0], sizes = [2, 8, 480], strides = [1, 1, 1]} : vector<2x8x512xf32> to vector<2x8x480xf32>
    %28 = vector.extract_strided_slice %26 {offsets = [0, 0, 32], sizes = [2, 8, 480], strides = [1, 1, 1]} : vector<2x8x512xf32> to vector<2x8x480xf32>
    %29 = arith.maximumf %27, %28 : vector<2x8x480xf32>
    %c0_12 = arith.constant 0 : index
    %c0_13 = arith.constant 0 : index
    %30 = vector.load %arg3[%c0_12, %c0_13] : memref<1x480xf32, #tpu.memory_space<vmem>>, vector<1x480xf32>
    %31 = vector.shape_cast %30 : vector<1x480xf32> to vector<1x1x480xf32>
    %32 = vector.broadcast %31 : vector<1x1x480xf32> to vector<2x8x480xf32>
    %33 = arith.addf %29, %32 : vector<2x8x480xf32>
    %34 = math.tanh %33 : vector<2x8x480xf32>
    %35 = arith.truncf %34 : vector<2x8x480xf32> to vector<2x8x480xbf16>
    %cst_14 = arith.constant 0.000000e+00 : bf16
    %36 = vector.broadcast %cst_14 : bf16 to vector<2x1x480xbf16>
    %37 = tpu.concatenate %36, %35, %36 in 1 : vector<2x1x480xbf16>, vector<2x8x480xbf16>, vector<2x1x480xbf16> -> vector<2x10x480xbf16>
    %38 = vector.extract_strided_slice %37 {offsets = [0, 0, 0], sizes = [2, 8, 480], strides = [1, 1, 1]} : vector<2x10x480xbf16> to vector<2x8x480xbf16>
    %39 = vector.shape_cast %38 : vector<2x8x480xbf16> to vector<16x480xbf16>
    %c0_15 = arith.constant 0 : index
    %c0_16 = arith.constant 0 : index
    %c0_17 = arith.constant 0 : index
    %40 = vector.load %arg4[%c0_15, %c0_16, %c0_17] : memref<3x480x128xbf16, #tpu.memory_space<vmem>>, vector<1x480x128xbf16>
    %41 = vector.shape_cast %40 : vector<1x480x128xbf16> to vector<480x128xbf16>
    %cst_18 = arith.constant dense<0.000000e+00> : vector<16x128xf32>
    %42 = tpu.matmul %39, %41, %cst_18 {dimension_numbers = #tpu.dot_dimension_numbers<[1], [0], [0], [1], [0, 0, 1, 1], [], []>} : vector<16x480xbf16>, vector<480x128xbf16>, vector<16x128xf32> -> vector<16x128xf32>
    %43 = vector.extract_strided_slice %37 {offsets = [0, 1, 0], sizes = [2, 8, 480], strides = [1, 1, 1]} : vector<2x10x480xbf16> to vector<2x8x480xbf16>
    %44 = vector.shape_cast %43 : vector<2x8x480xbf16> to vector<16x480xbf16>
    %c1_19 = arith.constant 1 : index
    %c0_20 = arith.constant 0 : index
    %c0_21 = arith.constant 0 : index
    %45 = vector.load %arg4[%c1_19, %c0_20, %c0_21] : memref<3x480x128xbf16, #tpu.memory_space<vmem>>, vector<1x480x128xbf16>
    %46 = vector.shape_cast %45 : vector<1x480x128xbf16> to vector<480x128xbf16>
    %cst_22 = arith.constant dense<0.000000e+00> : vector<16x128xf32>
    %47 = tpu.matmul %44, %46, %cst_22 {dimension_numbers = #tpu.dot_dimension_numbers<[1], [0], [0], [1], [0, 0, 1, 1], [], []>} : vector<16x480xbf16>, vector<480x128xbf16>, vector<16x128xf32> -> vector<16x128xf32>
    %48 = arith.addf %42, %47 : vector<16x128xf32>
    %49 = vector.extract_strided_slice %37 {offsets = [0, 2, 0], sizes = [2, 8, 480], strides = [1, 1, 1]} : vector<2x10x480xbf16> to vector<2x8x480xbf16>
    %50 = vector.shape_cast %49 : vector<2x8x480xbf16> to vector<16x480xbf16>
    %c2_23 = arith.constant 2 : index
    %c0_24 = arith.constant 0 : index
    %c0_25 = arith.constant 0 : index
    %51 = vector.load %arg4[%c2_23, %c0_24, %c0_25] : memref<3x480x128xbf16, #tpu.memory_space<vmem>>, vector<1x480x128xbf16>
    %52 = vector.shape_cast %51 : vector<1x480x128xbf16> to vector<480x128xbf16>
    %cst_26 = arith.constant dense<0.000000e+00> : vector<16x128xf32>
    %53 = tpu.matmul %50, %52, %cst_26 {dimension_numbers = #tpu.dot_dimension_numbers<[1], [0], [0], [1], [0, 0, 1, 1], [], []>} : vector<16x480xbf16>, vector<480x128xbf16>, vector<16x128xf32> -> vector<16x128xf32>
    %54 = arith.addf %48, %53 : vector<16x128xf32>
    %55 = vector.shape_cast %54 : vector<16x128xf32> to vector<2x4x2x128xf32>
    %56 = vector.extract_strided_slice %55 {offsets = [0, 0, 0, 0], sizes = [2, 4, 1, 128], strides = [1, 1, 1, 1]} : vector<2x4x2x128xf32> to vector<2x4x1x128xf32>
    %57 = vector.shape_cast %56 : vector<2x4x1x128xf32> to vector<2x4x128xf32>
    %58 = vector.extract_strided_slice %55 {offsets = [0, 0, 1, 0], sizes = [2, 4, 1, 128], strides = [1, 1, 1, 1]} : vector<2x4x2x128xf32> to vector<2x4x1x128xf32>
    %59 = vector.shape_cast %58 : vector<2x4x1x128xf32> to vector<2x4x128xf32>
    %60 = arith.maximumf %57, %59 : vector<2x4x128xf32>
    %61 = vector.extract_strided_slice %60 {offsets = [0, 0, 0], sizes = [2, 4, 112], strides = [1, 1, 1]} : vector<2x4x128xf32> to vector<2x4x112xf32>
    %62 = vector.extract_strided_slice %60 {offsets = [0, 0, 16], sizes = [2, 4, 112], strides = [1, 1, 1]} : vector<2x4x128xf32> to vector<2x4x112xf32>
    %63 = arith.maximumf %61, %62 : vector<2x4x112xf32>
    %c0_27 = arith.constant 0 : index
    %c0_28 = arith.constant 0 : index
    %64 = vector.load %arg5[%c0_27, %c0_28] : memref<1x112xf32, #tpu.memory_space<vmem>>, vector<1x112xf32>
    %65 = vector.shape_cast %64 : vector<1x112xf32> to vector<1x1x112xf32>
    %66 = vector.broadcast %65 : vector<1x1x112xf32> to vector<2x4x112xf32>
    %67 = arith.addf %63, %66 : vector<2x4x112xf32>
    %68 = math.tanh %67 : vector<2x4x112xf32>
    %69 = vector.extract_strided_slice %68 {offsets = [0, 0, 0], sizes = [2, 1, 112], strides = [1, 1, 1]} : vector<2x4x112xf32> to vector<2x1x112xf32>
    %70 = vector.shape_cast %69 : vector<2x1x112xf32> to vector<2x112xf32>
    %c0_29 = arith.constant 0 : index
    %c0_30 = arith.constant 0 : index
    %c0_31 = arith.constant 0 : index
    %71 = vector.load %arg6[%c0_29, %c0_30, %c0_31] : memref<4x112x32xf32, #tpu.memory_space<vmem>>, vector<1x112x32xf32>
    %72 = vector.shape_cast %71 : vector<1x112x32xf32> to vector<112x32xf32>
    %cst_32 = arith.constant dense<0.000000e+00> : vector<2x32xf32>
    %73 = tpu.matmul %70, %72, %cst_32 {dimension_numbers = #tpu.dot_dimension_numbers<[1], [0], [0], [1], [0, 0, 1, 1], [], []>} : vector<2x112xf32>, vector<112x32xf32>, vector<2x32xf32> -> vector<2x32xf32>
    %74 = vector.extract_strided_slice %68 {offsets = [0, 1, 0], sizes = [2, 1, 112], strides = [1, 1, 1]} : vector<2x4x112xf32> to vector<2x1x112xf32>
    %75 = vector.shape_cast %74 : vector<2x1x112xf32> to vector<2x112xf32>
    %c1_33 = arith.constant 1 : index
    %c0_34 = arith.constant 0 : index
    %c0_35 = arith.constant 0 : index
    %76 = vector.load %arg6[%c1_33, %c0_34, %c0_35] : memref<4x112x32xf32, #tpu.memory_space<vmem>>, vector<1x112x32xf32>
    %77 = vector.shape_cast %76 : vector<1x112x32xf32> to vector<112x32xf32>
    %cst_36 = arith.constant dense<0.000000e+00> : vector<2x32xf32>
    %78 = tpu.matmul %75, %77, %cst_36 {dimension_numbers = #tpu.dot_dimension_numbers<[1], [0], [0], [1], [0, 0, 1, 1], [], []>} : vector<2x112xf32>, vector<112x32xf32>, vector<2x32xf32> -> vector<2x32xf32>
    %79 = arith.addf %73, %78 : vector<2x32xf32>
    %80 = vector.extract_strided_slice %68 {offsets = [0, 2, 0], sizes = [2, 1, 112], strides = [1, 1, 1]} : vector<2x4x112xf32> to vector<2x1x112xf32>
    %81 = vector.shape_cast %80 : vector<2x1x112xf32> to vector<2x112xf32>
    %c2_37 = arith.constant 2 : index
    %c0_38 = arith.constant 0 : index
    %c0_39 = arith.constant 0 : index
    %82 = vector.load %arg6[%c2_37, %c0_38, %c0_39] : memref<4x112x32xf32, #tpu.memory_space<vmem>>, vector<1x112x32xf32>
    %83 = vector.shape_cast %82 : vector<1x112x32xf32> to vector<112x32xf32>
    %cst_40 = arith.constant dense<0.000000e+00> : vector<2x32xf32>
    %84 = tpu.matmul %81, %83, %cst_40 {dimension_numbers = #tpu.dot_dimension_numbers<[1], [0], [0], [1], [0, 0, 1, 1], [], []>} : vector<2x112xf32>, vector<112x32xf32>, vector<2x32xf32> -> vector<2x32xf32>
    %85 = arith.addf %79, %84 : vector<2x32xf32>
    %86 = vector.extract_strided_slice %68 {offsets = [0, 3, 0], sizes = [2, 1, 112], strides = [1, 1, 1]} : vector<2x4x112xf32> to vector<2x1x112xf32>
    %87 = vector.shape_cast %86 : vector<2x1x112xf32> to vector<2x112xf32>
    %c3 = arith.constant 3 : index
    %c0_41 = arith.constant 0 : index
    %c0_42 = arith.constant 0 : index
    %88 = vector.load %arg6[%c3, %c0_41, %c0_42] : memref<4x112x32xf32, #tpu.memory_space<vmem>>, vector<1x112x32xf32>
    %89 = vector.shape_cast %88 : vector<1x112x32xf32> to vector<112x32xf32>
    %cst_43 = arith.constant dense<0.000000e+00> : vector<2x32xf32>
    %90 = tpu.matmul %87, %89, %cst_43 {dimension_numbers = #tpu.dot_dimension_numbers<[1], [0], [0], [1], [0, 0, 1, 1], [], []>} : vector<2x112xf32>, vector<112x32xf32>, vector<2x32xf32> -> vector<2x32xf32>
    %91 = arith.addf %85, %90 : vector<2x32xf32>
    %c0_44 = arith.constant 0 : index
    %c0_45 = arith.constant 0 : index
    %92 = vector.load %arg7[%c0_44, %c0_45] : memref<1x32xf32, #tpu.memory_space<vmem>>, vector<1x32xf32>
    %93 = vector.broadcast %92 : vector<1x32xf32> to vector<2x32xf32>
    %94 = arith.addf %91, %93 : vector<2x32xf32>
    %95 = math.tanh %94 : vector<2x32xf32>
    %c0_46 = arith.constant 0 : index
    %c0_47 = arith.constant 0 : index
    %96 = vector.load %arg8[%c0_46, %c0_47] : memref<32x128xf32, #tpu.memory_space<vmem>>, vector<32x128xf32>
    %cst_48 = arith.constant dense<0.000000e+00> : vector<2x128xf32>
    %97 = tpu.matmul %95, %96, %cst_48 {dimension_numbers = #tpu.dot_dimension_numbers<[1], [0], [0], [1], [0, 0, 1, 1], [], []>} : vector<2x32xf32>, vector<32x128xf32>, vector<2x128xf32> -> vector<2x128xf32>
    %c0_49 = arith.constant 0 : index
    %c0_50 = arith.constant 0 : index
    %98 = vector.load %arg9[%c0_49, %c0_50] : memref<1x128xf32, #tpu.memory_space<vmem>>, vector<1x128xf32>
    %99 = vector.broadcast %98 : vector<1x128xf32> to vector<2x128xf32>
    %100 = arith.addf %97, %99 : vector<2x128xf32>
    %c0_51 = arith.constant 0 : index
    %c0_52 = arith.constant 0 : index
    %101 = vector.load %arg10[%c0_51, %c0_52] : memref<2x128xf32, #tpu.memory_space<vmem>>, vector<2x128xf32>
    tpu.vector_store %arg10[%c0_51, %c0_52], %100 {strides = array<i32>} : memref<2x128xf32, #tpu.memory_space<vmem>>, vector<2x128xf32>,
    return
  }
  func.func @transform_0(%arg0: i32) -> (i32, i32, i32) {
    %c0_i32 = arith.constant 0 : i32
    %c0_i32_0 = arith.constant 0 : i32
    %c0_i32_1 = arith.constant 0 : i32
    return %arg0, %c0_i32, %c0_i32_0 : i32, i32, i32
  }
  func.func @transform_1(%arg0: i32) -> (i32, i32, i32) {
    %c0_i32 = arith.constant 0 : i32
    %c0_i32_0 = arith.constant 0 : i32
    %c0_i32_1 = arith.constant 0 : i32
    %c0_i32_2 = arith.constant 0 : i32
    return %c0_i32, %c0_i32_0, %c0_i32_1 : i32, i32, i32
  }
  func.func @transform_2(%arg0: i32) -> (i32, i32) {
    %c0_i32 = arith.constant 0 : i32
    %c0_i32_0 = arith.constant 0 : i32
    %c0_i32_1 = arith.constant 0 : i32
    return %c0_i32, %c0_i32_0 : i32, i32
  }
  func.func @transform_3(%arg0: i32) -> (i32, i32, i32) {
    %c0_i32 = arith.constant 0 : i32
    %c0_i32_0 = arith.constant 0 : i32
    %c0_i32_1 = arith.constant 0 : i32
    %c0_i32_2 = arith.constant 0 : i32
    return %c0_i32, %c0_i32_0, %c0_i32_1 : i32, i32, i32
  }
  func.func @transform_4(%arg0: i32) -> (i32, i32) {
    %c0_i32 = arith.constant 0 : i32
    %c0_i32_0 = arith.constant 0 : i32
    %c0_i32_1 = arith.constant 0 : i32
    return %c0_i32, %c0_i32_0 : i32, i32
  }
  func.func @transform_5(%arg0: i32) -> (i32, i32, i32) {
    %c0_i32 = arith.constant 0 : i32
    %c0_i32_0 = arith.constant 0 : i32
    %c0_i32_1 = arith.constant 0 : i32
    %c0_i32_2 = arith.constant 0 : i32
    return %c0_i32, %c0_i32_0, %c0_i32_1 : i32, i32, i32
  }
  func.func @transform_6(%arg0: i32) -> (i32, i32) {
    %c0_i32 = arith.constant 0 : i32
    %c0_i32_0 = arith.constant 0 : i32
    %c0_i32_1 = arith.constant 0 : i32
    return %c0_i32, %c0_i32_0 : i32, i32
  }
  func.func @transform_7(%arg0: i32) -> (i32, i32) {
    %c0_i32 = arith.constant 0 : i32
    %c0_i32_0 = arith.constant 0 : i32
    %c0_i32_1 = arith.constant 0 : i32
    return %c0_i32, %c0_i32_0 : i32, i32
  }
  func.func @transform_8(%arg0: i32) -> (i32, i32) {
    %c0_i32 = arith.constant 0 : i32
    %c0_i32_0 = arith.constant 0 : i32
    %c0_i32_1 = arith.constant 0 : i32
    return %c0_i32, %c0_i32_0 : i32, i32
  }
  func.func @transform_9(%arg0: i32) -> (i32, i32) {
    %c0_i32 = arith.constant 0 : i32
    %c0_i32_0 = arith.constant 0 : i32
    return %arg0, %c0_i32 : i32, i32
  }
}

</mosaic_0001>

<llo_original>
// kernel: netwidth_forward.1
$region0: #{netwidth_forward.1}
  #allocation0 [shape = 'u32[]', space=smem, size = 0x4, offset = 0x4, fixed_abs, tag = 'smem constant byte address 0x4 - core index']
  #allocation1 [shape = 'u32[72,128]{1,0:T(1,128)}', space=vmem, size = 0x9000, scoped, tag = 'internal scratch']
  %s0 = inlined_call_operand.vmem [shape: f32[2,16,16], index: 0, kind: input, shape index: {}]
  %s1 = inlined_call_operand.vmem [shape: bf16[3,16,512], index: 1, kind: input, shape index: {}]
  %s2 = inlined_call_operand.vmem [shape: f32[1,480], index: 2, kind: input, shape index: {}]
  %s3 = inlined_call_operand.hbm [shape: bf16[3,480,128], index: 3, kind: input, shape index: {}]
  %s4 = inlined_call_operand.vmem [shape: f32[1,112], index: 4, kind: input, shape index: {}]
  %s5 = inlined_call_operand.vmem [shape: f32[4,112,32], index: 5, kind: input, shape index: {}]
  %s6 = inlined_call_operand.vmem [shape: f32[1,32], index: 6, kind: input, shape index: {}]
  %s7 = inlined_call_operand.vmem [shape: f32[32,128], index: 7, kind: input, shape index: {}]
  %s8 = inlined_call_operand.vmem [shape: f32[1,128], index: 8, kind: input, shape index: {}]
  %s9 = inlined_call_operand.hbm [shape: f32[2,128], index: 9, kind: output, shape index: {}]
  %s10 = sld [smem:[#allocation0]]
  $region50: #{netwidth_forward.1} parent=0
    _
  %s12 = ssub.s32 1, %s10
  %s13 = scalar_select 0, %s12, %s10
  $region1: #{netwidth_forward.1} parent=0
    #allocation2 [shape = 'u8[368640]{0}', space=vmem, size = 0x5a000, scoped, tag = 'input window, operand 3, single buffered']
    #allocation3 [shape = 's32[1]{0}', space=sflag, size = 0x4, scoped, tag = 'scoped memory for netwidth_forward.1']
    #allocation4 [shape = 's32[1]{0}', space=sflag, size = 0x4, scoped, tag = 'scoped memory for netwidth_forward.1']
    #allocation5 [shape = 'u8[1024]{0}', space=vmem, size = 0x400, scoped, tag = 'output window, operand 0, single buffered']
    %14 = vsyncpa [#allocation3], 0
    %15 = vsyncpa [#allocation4], 0
    // Predicated region
    $region2: #{netwidth_forward.1} parent=1 // pred_check
      _
    $region3: #{netwidth_forward.1} parent=1 // pred_check_branch
      %17 = sbr.rel (0) target = $region5
    $region4: #{netwidth_forward.1} parent=1 // pred_region
      _
    $region5: #{netwidth_forward.1} parent=1 // pred_fallthru
      _
    // Predicated region
    $region6: #{netwidth_forward.1} parent=1 // pred_check
      _
    $region7: #{netwidth_forward.1} parent=1 // pred_check_branch
      %19 = sbr.rel (0) target = $region9
    $region8: #{netwidth_forward.1} parent=1 // pred_region
      _
    $region9: #{netwidth_forward.1} parent=1 // pred_fallthru
      _
    // Predicated region
    $region10: #{netwidth_forward.1} parent=1 // pred_check
      _
    $region11: #{netwidth_forward.1} parent=1 // pred_check_branch
      %21 = sbr.rel (0) target = $region13
    $region12: #{netwidth_forward.1} parent=1 // pred_region
      _
    $region13: #{netwidth_forward.1} parent=1 // pred_fallthru
      _
    // Predicated region
    $region14: #{netwidth_forward.1} parent=1 // pred_check
      _
    $region15: #{netwidth_forward.1} parent=1 // pred_check_branch
      %23 = sbr.rel (0) target = $region17
    $region16: #{netwidth_forward.1} parent=1 // pred_region
      %25 = vsyncadd [#allocation3], 0
      %s26 = sshll.u32 %s3, 4
      %s27 = int_to_ptr.hbm [resolvable:$true] %s26
      %s28 = sshll.u32 [#allocation2], 4
      %s29 = int_to_ptr.vmem [resolvable:$true] %s28
      %34 = dma.hbm_to_vmem [thread:$0]  %s27, 11520, %s29, [#allocation3], 64, 64, 4
    $region17: #{netwidth_forward.1} parent=1 // pred_fallthru
      _
    // Predicated region
    $region18: #{netwidth_forward.1} parent=1 // pred_check
      _
    $region19: #{netwidth_forward.1} parent=1 // pred_check_branch
      %36 = sbr.rel (0) target = $region21
    $region20: #{netwidth_forward.1} parent=1 // pred_region
      _
    $region21: #{netwidth_forward.1} parent=1 // pred_fallthru
      _
    // Predicated region
    $region22: #{netwidth_forward.1} parent=1 // pred_check
      _
    $region23: #{netwidth_forward.1} parent=1 // pred_check_branch
      %38 = sbr.rel (0) target = $region25
    $region24: #{netwidth_forward.1} parent=1 // pred_region
      _
    $region25: #{netwidth_forward.1} parent=1 // pred_fallthru
      _
    // Predicated region
    $region26: #{netwidth_forward.1} parent=1 // pred_check
      _
    $region27: #{netwidth_forward.1} parent=1 // pred_check_branch
      %40 = sbr.rel (0) target = $region29
    $region28: #{netwidth_forward.1} parent=1 // pred_region
      _
    $region29: #{netwidth_forward.1} parent=1 // pred_fallthru
      _
    // Predicated region
    $region30: #{netwidth_forward.1} parent=1 // pred_check
      _
    $region31: #{netwidth_forward.1} parent=1 // pred_check_branch
      %42 = sbr.rel (0) target = $region33
    $region32: #{netwidth_forward.1} parent=1 // pred_region
      _
    $region33: #{netwidth_forward.1} parent=1 // pred_fallthru
      _
    // Predicated region
    $region34: #{netwidth_forward.1} parent=1 // pred_check
      _
    $region35: #{netwidth_forward.1} parent=1 // pred_check_branch
      %44 = sbr.rel (0) target = $region37
    $region36: #{netwidth_forward.1} parent=1 // pred_region
      _
    $region37: #{netwidth_forward.1} parent=1 // pred_fallthru
      _
    // Predicated region
    $region38: #{netwidth_forward.1} parent=1 // pred_check
      _
    $region39: #{netwidth_forward.1} parent=1 // pred_check_branch
      %46 = sbr.rel (0) target = $region41
    $region40: #{netwidth_forward.1} parent=1 // pred_region
      %48 = dma.done [#allocation3], 11520
    $region41: #{netwidth_forward.1} parent=1 // pred_fallthru
      _
    %v50 = vld [vmem:[%s0] sm:$0xff]
    %v51 = vld [vmem:[%s0 + $0x8] sm:$0xff]
    %v52 = vld [vmem:[%s0 + $0x10] sm:$0xff]
    %v53 = vld [vmem:[%s0 + $0x18] sm:$0xff]
    %v54 = vpack.c.bf16 %v50, %v50
    %v55 = vpack.c.bf16 %v51, %v51
    %v56 = vpack.c.bf16 %v52, %v52
    %v57 = vpack.c.bf16 %v53, %v53
    %v62 = vunpack.c.l.b16 %v54
    %v63 = vunpack.c.l.b16 %v55
    %v64 = vunpack.c.l.b16 %v56
    %v65 = vunpack.c.l.b16 %v57
    %v66 = vpack.c.b16 %v63, %v62
    %v67 = vpack.c.b16 %v65, %v64
    %v69 = vshrl.u32 %v66, 16
    %v71 = vrot.slane %v69, 7
    %v72 = vshll.u32 %v66, 16
    %v74 = vor.u32 %v71, %v72
    %v76 = vshrl.u32 %v67, 16
    %v78 = vrot.slane %v76, 7
    %v79 = vshll.u32 %v67, 16
    %v81 = vor.u32 %v78, %v79
    %vm86 = vcmask 1040384
    %vm87 = vsmask.f32 256
    %vm88 = vmand %vm86, %vm87
    %v89 = vsel %vm88, 0, %v74
    %v90 = vsel %vm88, 0, %v81
    %v91 = vsel %vm88, %v71, 0
    %v92 = vsel %vm88, %v78, 0
    %v93 = vld [vmem:[%s1] sm:$0xff]
    %v94 = vld [vmem:[%s1 + $0x8] sm:$0xff]
    %v95 = vld [vmem:[%s1 + $0x10] sm:$0xff]
    %v96 = vld [vmem:[%s1 + $0x18] sm:$0xff]
    %vm97 = vsmask.f32 7424
    %v99 = vshrl.u32 %v89, 16
    %v101 = vshll.u32 %v89, 16
    %v103 = vrot.slane %v101, 1
    %v104 = vor.u32 %v99, %v103
    %v106 = vshll.u32 %v91, 16
    %v108 = vrot.slane %v106, 1
    %v109 = vsel %vm97, %v104, %v108
    %v111 = vshrl.u32 %v90, 16
    %v113 = vshll.u32 %v90, 16
    %v115 = vrot.slane %v113, 1
    %v116 = vor.u32 %v111, %v115
    %v118 = vshll.u32 %v92, 16
    %v120 = vrot.slane %v118, 1
    %v121 = vsel %vm97, %v116, %v120
    %s122 = scalar_lea.vmem %s1, 32
    %v123 = vld [vmem:[%s122] sm:$0xff]
    %v124 = vld [vmem:[%s122 + $0x8] sm:$0xff]
    %v125 = vld [vmem:[%s122 + $0x10] sm:$0xff]
    %v126 = vld [vmem:[%s122 + $0x18] sm:$0xff]
    %v131 = vunpack.c.l.b16 %v123
    %v132 = vunpack.c.h.b16 %v123
    %v133 = vunpack.c.l.b16 %v124
    %v134 = vunpack.c.h.b16 %v124
    %v135 = vunpack.c.l.b16 %v125
    %v136 = vunpack.c.h.b16 %v125
    %v137 = vunpack.c.l.b16 %v126
    %v138 = vunpack.c.h.b16 %v126
    %v139 = vpack.c.b16 %v135, %v131
    %v140 = vpack.c.b16 %v136, %v132
    %v141 = vpack.c.b16 %v137, %v133
    %v142 = vpack.c.b16 %v138, %v134
    %vm147 = vcmask 130048
    %v149 = vsel %vm147, %v109, 0
    %v152 = vsel %vm147, %v121, 0
    %154 = vmatpush.bf16.msra.mxu0 0
    %155 = vmatpush.bf16.msra.mxu0 0
    %156 = vmatpush.bf16.msra.mxu0 0
    %157 = vmatpush.bf16.msra.mxu0 0
    %158 = vmatpush.bf16.msra.mxu0 0
    %159 = vmatpush.bf16.msra.mxu0 0
    %160 = vmatpush.bf16.msra.mxu0 0
    %161 = vmatpush.bf16.msra.mxu0 %v139
    %162 = vmatmul.bf16.gmra.mxu0 %v149
    %v163 = vpop.f32.mrf.mxu0
    %v164 = vadd.f32 0.0, %v163
    %v165 = vpop.f32.mrf.mxu0
    %v166 = vadd.f32 0.0, %v165
    %167 = vmatmul.bf16.gmra.mxu0 %v152
    %v168 = vpop.f32.mrf.mxu0
    %v169 = vadd.f32 0.0, %v168
    %v170 = vpop.f32.mrf.mxu0
    %v171 = vadd.f32 0.0, %v170
    %172 = vdwg.mxu0
    %173 = vmatpush.bf16.msra.mxu0 0
    %174 = vmatpush.bf16.msra.mxu0 0
    %175 = vmatpush.bf16.msra.mxu0 0
    %176 = vmatpush.bf16.msra.mxu0 0
    %177 = vmatpush.bf16.msra.mxu0 0
    %178 = vmatpush.bf16.msra.mxu0 0
    %179 = vmatpush.bf16.msra.mxu0 0
    %180 = vmatpush.bf16.msra.mxu0 %v140
    %181 = vmatmul.bf16.gmra.mxu0 %v149
    %v182 = vpop.f32.mrf.mxu0
    %v183 = vadd.f32 0.0, %v182
    %v184 = vpop.f32.mrf.mxu0
    %v185 = vadd.f32 0.0, %v184
    %186 = vmatmul.bf16.gmra.mxu0 %v152
    %v187 = vpop.f32.mrf.mxu0
    %v188 = vadd.f32 0.0, %v187
    %v189 = vpop.f32.mrf.mxu0
    %v190 = vadd.f32 0.0, %v189
    %191 = vdwg.mxu0
    %192 = vmatpush.bf16.msra.mxu0 0
    %193 = vmatpush.bf16.msra.mxu0 0
    %194 = vmatpush.bf16.msra.mxu0 0
    %195 = vmatpush.bf16.msra.mxu0 0
    %196 = vmatpush.bf16.msra.mxu0 0
    %197 = vmatpush.bf16.msra.mxu0 0
    %198 = vmatpush.bf16.msra.mxu0 0
    %199 = vmatpush.bf16.msra.mxu0 %v141
    %200 = vmatmul.bf16.gmra.mxu0 %v149
    %v201 = vpop.f32.mrf.mxu0
    %v202 = vadd.f32 0.0, %v201
    %v203 = vpop.f32.mrf.mxu0
    %v204 = vadd.f32 0.0, %v203
    %205 = vmatmul.bf16.gmra.mxu0 %v152
    %v206 = vpop.f32.mrf.mxu0
    %v207 = vadd.f32 0.0, %v206
    %v208 = vpop.f32.mrf.mxu0
    %v209 = vadd.f32 0.0, %v208
    %210 = vdwg.mxu0
    %211 = vmatpush.bf16.msra.mxu0 0
    %212 = vmatpush.bf16.msra.mxu0 0
    %213 = vmatpush.bf16.msra.mxu0 0
    %214 = vmatpush.bf16.msra.mxu0 0
    %215 = vmatpush.bf16.msra.mxu0 0
    %216 = vmatpush.bf16.msra.mxu0 0
    %217 = vmatpush.bf16.msra.mxu0 0
    %218 = vmatpush.bf16.msra.mxu0 %v142
    %219 = vmatmul.bf16.gmra.mxu0 %v149
    %v220 = vpop.f32.mrf.mxu0
    %v221 = vadd.f32 0.0, %v220
    %v222 = vpop.f32.mrf.mxu0
    %v223 = vadd.f32 0.0, %v222
    %224 = vmatmul.bf16.gmra.mxu0 %v152
    %v225 = vpop.f32.mrf.mxu0
    %v226 = vadd.f32 0.0, %v225
    %v227 = vpop.f32.mrf.mxu0
    %v228 = vadd.f32 0.0, %v227
    %229 = vdwg.mxu0
    %v234 = vunpack.c.l.b16 %v93
    %v235 = vunpack.c.h.b16 %v93
    %v236 = vunpack.c.l.b16 %v94
    %v237 = vunpack.c.h.b16 %v94
    %v238 = vunpack.c.l.b16 %v95
    %v239 = vunpack.c.h.b16 %v95
    %v240 = vunpack.c.l.b16 %v96
    %v241 = vunpack.c.h.b16 %v96
    %v242 = vpack.c.b16 %v238, %v234
    %v243 = vpack.c.b16 %v239, %v235
    %v244 = vpack.c.b16 %v240, %v236
    %v245 = vpack.c.b16 %v241, %v237
    %v250 = vsel %vm147, %v89, 0
    %v252 = vsel %vm147, %v90, 0
    %254 = vmatpush.bf16.msra.mxu0 0
    %255 = vmatpush.bf16.msra.mxu0 0
    %256 = vmatpush.bf16.msra.mxu0 0
    %257 = vmatpush.bf16.msra.mxu0 0
    %258 = vmatpush.bf16.msra.mxu0 0
    %259 = vmatpush.bf16.msra.mxu0 0
    %260 = vmatpush.bf16.msra.mxu0 0
    %261 = vmatpush.bf16.msra.mxu0 %v242
    %262 = vmatmul.bf16.gmra.mxu0 %v250
    %v263 = vpop.f32.mrf.mxu0
    %v264 = vadd.f32 %v164, %v263
    %v265 = vpop.f32.mrf.mxu0
    %v266 = vadd.f32 %v166, %v265
    %267 = vmatmul.bf16.gmra.mxu0 %v252
    %v268 = vpop.f32.mrf.mxu0
    %v269 = vadd.f32 %v169, %v268
    %v270 = vpop.f32.mrf.mxu0
    %v271 = vadd.f32 %v171, %v270
    %272 = vdwg.mxu0
    %273 = vmatpush.bf16.msra.mxu0 0
    %274 = vmatpush.bf16.msra.mxu0 0
    %275 = vmatpush.bf16.msra.mxu0 0
    %276 = vmatpush.bf16.msra.mxu0 0
    %277 = vmatpush.bf16.msra.mxu0 0
    %278 = vmatpush.bf16.msra.mxu0 0
    %279 = vmatpush.bf16.msra.mxu0 0
    %280 = vmatpush.bf16.msra.mxu0 %v243
    %281 = vmatmul.bf16.gmra.mxu0 %v250
    %v282 = vpop.f32.mrf.mxu0
    %v283 = vadd.f32 %v183, %v282
    %v284 = vpop.f32.mrf.mxu0
    %v285 = vadd.f32 %v185, %v284
    %286 = vmatmul.bf16.gmra.mxu0 %v252
    %v287 = vpop.f32.mrf.mxu0
    %v288 = vadd.f32 %v188, %v287
    %v289 = vpop.f32.mrf.mxu0
    %v290 = vadd.f32 %v190, %v289
    %291 = vdwg.mxu0
    %292 = vmatpush.bf16.msra.mxu0 0
    %293 = vmatpush.bf16.msra.mxu0 0
    %294 = vmatpush.bf16.msra.mxu0 0
    %295 = vmatpush.bf16.msra.mxu0 0
    %296 = vmatpush.bf16.msra.mxu0 0
    %297 = vmatpush.bf16.msra.mxu0 0
    %298 = vmatpush.bf16.msra.mxu0 0
    %299 = vmatpush.bf16.msra.mxu0 %v244
    %300 = vmatmul.bf16.gmra.mxu0 %v250
    %v301 = vpop.f32.mrf.mxu0
    %v302 = vadd.f32 %v202, %v301
    %v303 = vpop.f32.mrf.mxu0
    %v304 = vadd.f32 %v204, %v303
    %305 = vmatmul.bf16.gmra.mxu0 %v252
    %v306 = vpop.f32.mrf.mxu0
    %v307 = vadd.f32 %v207, %v306
    %v308 = vpop.f32.mrf.mxu0
    %v309 = vadd.f32 %v209, %v308
    %310 = vdwg.mxu0
    %311 = vmatpush.bf16.msra.mxu0 0
    %312 = vmatpush.bf16.msra.mxu0 0
    %313 = vmatpush.bf16.msra.mxu0 0
    %314 = vmatpush.bf16.msra.mxu0 0
    %315 = vmatpush.bf16.msra.mxu0 0
    %316 = vmatpush.bf16.msra.mxu0 0
    %317 = vmatpush.bf16.msra.mxu0 0
    %318 = vmatpush.bf16.msra.mxu0 %v245
    %319 = vmatmul.bf16.gmra.mxu0 %v250
    %v320 = vpop.f32.mrf.mxu0
    %v321 = vadd.f32 %v221, %v320
    %v322 = vpop.f32.mrf.mxu0
    %v323 = vadd.f32 %v223, %v322
    %324 = vmatmul.bf16.gmra.mxu0 %v252
    %v325 = vpop.f32.mrf.mxu0
    %v326 = vadd.f32 %v226, %v325
    %v327 = vpop.f32.mrf.mxu0
    %v328 = vadd.f32 %v228, %v327
    %329 = vdwg.mxu0
    %vm334 = vcmask 1046528
    %v335 = vrot.slane %v89, 1
    %v336 = vrot.slane %v91, 1
    %v337 = vsel %vm334, %v335, %v336
    %v338 = vrot.slane %v90, 1
    %v339 = vrot.slane %v92, 1
    %v340 = vsel %vm334, %v338, %v339
    %s341 = scalar_lea.vmem %s1, 64
    %v342 = vld [vmem:[%s341] sm:$0xff]
    %v343 = vld [vmem:[%s341 + $0x8] sm:$0xff]
    %v344 = vld [vmem:[%s341 + $0x10] sm:$0xff]
    %v345 = vld [vmem:[%s341 + $0x18] sm:$0xff]
    %v350 = vunpack.c.l.b16 %v342
    %v351 = vunpack.c.h.b16 %v342
    %v352 = vunpack.c.l.b16 %v343
    %v353 = vunpack.c.h.b16 %v343
    %v354 = vunpack.c.l.b16 %v344
    %v355 = vunpack.c.h.b16 %v344
    %v356 = vunpack.c.l.b16 %v345
    %v357 = vunpack.c.h.b16 %v345
    %v358 = vpack.c.b16 %v354, %v350
    %v359 = vpack.c.b16 %v355, %v351
    %v360 = vpack.c.b16 %v356, %v352
    %v361 = vpack.c.b16 %v357, %v353
    %v367 = vsel %vm147, %v337, 0
    %v370 = vsel %vm147, %v340, 0
    %372 = vmatpush.bf16.msra.mxu0 0
    %373 = vmatpush.bf16.msra.mxu0 0
    %374 = vmatpush.bf16.msra.mxu0 0
    %375 = vmatpush.bf16.msra.mxu0 0
    %376 = vmatpush.bf16.msra.mxu0 0
    %377 = vmatpush.bf16.msra.mxu0 0
    %378 = vmatpush.bf16.msra.mxu0 0
    %379 = vmatpush.bf16.msra.mxu0 %v358
    %380 = vmatmul.bf16.gmra.mxu0 %v367
    %v381 = vpop.f32.mrf.mxu0
    %v382 = vadd.f32 0.0, %v381
    %v383 = vpop.f32.mrf.mxu0
    %v384 = vadd.f32 0.0, %v383
    %385 = vmatmul.bf16.gmra.mxu0 %v370
    %v386 = vpop.f32.mrf.mxu0
    %v387 = vadd.f32 0.0, %v386
    %v388 = vpop.f32.mrf.mxu0
    %v389 = vadd.f32 0.0, %v388
    %390 = vdwg.mxu0
    %391 = vmatpush.bf16.msra.mxu0 0
    %392 = vmatpush.bf16.msra.mxu0 0
    %393 = vmatpush.bf16.msra.mxu0 0
    %394 = vmatpush.bf16.msra.mxu0 0
    %395 = vmatpush.bf16.msra.mxu0 0
    %396 = vmatpush.bf16.msra.mxu0 0
    %397 = vmatpush.bf16.msra.mxu0 0
    %398 = vmatpush.bf16.msra.mxu0 %v359
    %399 = vmatmul.bf16.gmra.mxu0 %v367
    %v400 = vpop.f32.mrf.mxu0
    %v401 = vadd.f32 0.0, %v400
    %v402 = vpop.f32.mrf.mxu0
    %v403 = vadd.f32 0.0, %v402
    %404 = vmatmul.bf16.gmra.mxu0 %v370
    %v405 = vpop.f32.mrf.mxu0
    %v406 = vadd.f32 0.0, %v405
    %v407 = vpop.f32.mrf.mxu0
    %v408 = vadd.f32 0.0, %v407
    %409 = vdwg.mxu0
    %410 = vmatpush.bf16.msra.mxu0 0
    %411 = vmatpush.bf16.msra.mxu0 0
    %412 = vmatpush.bf16.msra.mxu0 0
    %413 = vmatpush.bf16.msra.mxu0 0
    %414 = vmatpush.bf16.msra.mxu0 0
    %415 = vmatpush.bf16.msra.mxu0 0
    %416 = vmatpush.bf16.msra.mxu0 0
    %417 = vmatpush.bf16.msra.mxu0 %v360
    %418 = vmatmul.bf16.gmra.mxu0 %v367
    %v419 = vpop.f32.mrf.mxu0
    %v420 = vadd.f32 0.0, %v419
    %v421 = vpop.f32.mrf.mxu0
    %v422 = vadd.f32 0.0, %v421
    %423 = vmatmul.bf16.gmra.mxu0 %v370
    %v424 = vpop.f32.mrf.mxu0
    %v425 = vadd.f32 0.0, %v424
    %v426 = vpop.f32.mrf.mxu0
    %v427 = vadd.f32 0.0, %v426
    %428 = vdwg.mxu0
    %429 = vmatpush.bf16.msra.mxu0 0
    %430 = vmatpush.bf16.msra.mxu0 0
    %431 = vmatpush.bf16.msra.mxu0 0
    %432 = vmatpush.bf16.msra.mxu0 0
    %433 = vmatpush.bf16.msra.mxu0 0
    %434 = vmatpush.bf16.msra.mxu0 0
    %435 = vmatpush.bf16.msra.mxu0 0
    %436 = vmatpush.bf16.msra.mxu0 %v361
    %437 = vmatmul.bf16.gmra.mxu0 %v367
    %v438 = vpop.f32.mrf.mxu0
    %v439 = vadd.f32 0.0, %v438
    %v440 = vpop.f32.mrf.mxu0
    %v441 = vadd.f32 0.0, %v440
    %442 = vmatmul.bf16.gmra.mxu0 %v370
    %v443 = vpop.f32.mrf.mxu0
    %v444 = vadd.f32 0.0, %v443
    %v445 = vpop.f32.mrf.mxu0
    %v446 = vadd.f32 0.0, %v445
    %447 = vdwg.mxu0
    %v448 = vadd.f32 %v264, %v382
    %v449 = vadd.f32 %v283, %v401
    %v450 = vadd.f32 %v302, %v420
    %v451 = vadd.f32 %v321, %v439
    %v452 = vadd.f32 %v266, %v384
    %v453 = vadd.f32 %v285, %v403
    %v454 = vadd.f32 %v304, %v422
    %v455 = vadd.f32 %v323, %v441
    %v456 = vadd.f32 %v269, %v387
    %v457 = vadd.f32 %v288, %v406
    %v458 = vadd.f32 %v307, %v425
    %v459 = vadd.f32 %v326, %v444
    %v460 = vadd.f32 %v271, %v389
    %v461 = vadd.f32 %v290, %v408
    %v462 = vadd.f32 %v309, %v427
    %v463 = vadd.f32 %v328, %v446
    %v480 = vrot.slane %v449, 6
    %v481 = vrot.slane %v450, 4
    %v482 = vrot.slane %v451, 2
    %v483 = vrot.slane %v453, 6
    %v484 = vrot.slane %v454, 4
    %v485 = vrot.slane %v455, 2
    %v486 = vrot.slane %v457, 6
    %v487 = vrot.slane %v458, 4
    %v488 = vrot.slane %v459, 2
    %v489 = vrot.slane %v461, 6
    %v490 = vrot.slane %v462, 4
    %v491 = vrot.slane %v463, 2
    %vm492 = vcmask 1041408
    %v493 = vsel %vm492, %v448, %v480
    %vm494 = vcmask 1045508
    %v495 = vsel %vm494, %v481, %v482
    %vm496 = vcmask 1043456
    %v497 = vsel %vm496, %v493, %v495
    %vm498 = vcmask 1043458
    %v499 = vsel %vm498, %v448, %v480
    %vm500 = vcmask 1045504
    %v501 = vsel %vm500, %v482, %v481
    %vm502 = vcmask 1045506
    %v503 = vsel %vm502, %v499, %v501
    %v504 = vrot.slane %v503, 2
    %v505 = vsel %vm494, %v448, %v480
    %v506 = vsel %vm492, %v481, %v482
    %v507 = vsel %vm496, %v506, %v505
    %v508 = vrot.slane %v507, 4
    %v509 = vsel %vm500, %v480, %v448
    %v510 = vsel %vm498, %v481, %v482
    %v511 = vsel %vm502, %v510, %v509
    %v512 = vrot.slane %v511, 6
    %v513 = vsel %vm492, %v452, %v483
    %v514 = vsel %vm494, %v484, %v485
    %v515 = vsel %vm496, %v513, %v514
    %v516 = vsel %vm498, %v452, %v483
    %v517 = vsel %vm500, %v485, %v484
    %v518 = vsel %vm502, %v516, %v517
    %v519 = vrot.slane %v518, 2
    %v520 = vsel %vm494, %v452, %v483
    %v521 = vsel %vm492, %v484, %v485
    %v522 = vsel %vm496, %v521, %v520
    %v523 = vrot.slane %v522, 4
    %v524 = vsel %vm500, %v483, %v452
    %v525 = vsel %vm498, %v484, %v485
    %v526 = vsel %vm502, %v525, %v524
    %v527 = vrot.slane %v526, 6
    %v528 = vsel %vm492, %v456, %v486
    %v529 = vsel %vm494, %v487, %v488
    %v530 = vsel %vm496, %v528, %v529
    %v531 = vsel %vm498, %v456, %v486
    %v532 = vsel %vm500, %v488, %v487
    %v533 = vsel %vm502, %v531, %v532
    %v534 = vrot.slane %v533, 2
    %v535 = vsel %vm494, %v456, %v486
    %v536 = vsel %vm492, %v487, %v488
    %v537 = vsel %vm496, %v536, %v535
    %v538 = vrot.slane %v537, 4
    %v539 = vsel %vm500, %v486, %v456
    %v540 = vsel %vm498, %v487, %v488
    %v541 = vsel %vm502, %v540, %v539
    %v542 = vrot.slane %v541, 6
    %v543 = vsel %vm492, %v460, %v489
    %v544 = vsel %vm494, %v490, %v491
    %v545 = vsel %vm496, %v543, %v544
    %v546 = vsel %vm498, %v460, %v489
    %v547 = vsel %vm500, %v491, %v490
    %v548 = vsel %vm502, %v546, %v547
    %v549 = vrot.slane %v548, 2
    %v550 = vsel %vm494, %v460, %v489
    %v551 = vsel %vm492, %v490, %v491
    %v552 = vsel %vm496, %v551, %v550
    %v553 = vrot.slane %v552, 4
    %v554 = vsel %vm500, %v489, %v460
    %v555 = vsel %vm498, %v490, %v491
    %v556 = vsel %vm502, %v555, %v554
    %v557 = vrot.slane %v556, 6
    %v574 = vrot.slane %v497, 7
    %v575 = vrot.slane %v574, 2
    %v576 = vrot.slane %v504, 7
    %v577 = vrot.slane %v576, 2
    %v578 = vrot.slane %v508, 7
    %v579 = vrot.slane %v578, 2
    %v580 = vrot.slane %v512, 7
    %v581 = vrot.slane %v580, 2
    %v582 = vrot.slane %v515, 7
    %v583 = vrot.slane %v582, 2
    %v584 = vrot.slane %v519, 7
    %v585 = vrot.slane %v584, 2
    %v586 = vrot.slane %v523, 7
    %v587 = vrot.slane %v586, 2
    %v588 = vrot.slane %v527, 7
    %v589 = vrot.slane %v588, 2
    %v590 = vrot.slane %v530, 7
    %v591 = vrot.slane %v590, 2
    %v592 = vrot.slane %v534, 7
    %v593 = vrot.slane %v592, 2
    %v594 = vrot.slane %v538, 7
    %v595 = vrot.slane %v594, 2
    %v596 = vrot.slane %v542, 7
    %v597 = vrot.slane %v596, 2
    %v598 = vrot.slane %v545, 7
    %v599 = vrot.slane %v598, 2
    %v600 = vrot.slane %v549, 7
    %v601 = vrot.slane %v600, 2
    %v602 = vrot.slane %v553, 7
    %v603 = vrot.slane %v602, 2
    %v604 = vrot.slane %v557, 7
    %v605 = vrot.slane %v604, 2
    %v622 = vmax.f32 %v497, %v575
    %v623 = vmax.f32 %v504, %v577
    %v624 = vmax.f32 %v508, %v579
    %v625 = vmax.f32 %v512, %v581
    %v626 = vmax.f32 %v515, %v583
    %v627 = vmax.f32 %v519, %v585
    %v628 = vmax.f32 %v523, %v587
    %v629 = vmax.f32 %v527, %v589
    %v630 = vmax.f32 %v530, %v591
    %v631 = vmax.f32 %v534, %v593
    %v632 = vmax.f32 %v538, %v595
    %v633 = vmax.f32 %v542, %v597
    %v634 = vmax.f32 %v545, %v599
    %v635 = vmax.f32 %v549, %v601
    %v636 = vmax.f32 %v553, %v603
    %v637 = vmax.f32 %v557, %v605
    %654 = vrot.lane.b32.xlu0 %v622, 96
    %v655 = vpop.permute.xlu0 %654
    %656 = vrot.lane.b32.xlu0 %v623, 96
    %v657 = vpop.permute.xlu0 %656
    %658 = vrot.lane.b32.xlu0 %v624, 96
    %v659 = vpop.permute.xlu0 %658
    %660 = vrot.lane.b32.xlu0 %v625, 96
    %v661 = vpop.permute.xlu0 %660
    %662 = vrot.lane.b32.xlu0 %v626, 96
    %v663 = vpop.permute.xlu0 %662
    %664 = vrot.lane.b32.xlu0 %v627, 96
    %v665 = vpop.permute.xlu0 %664
    %666 = vrot.lane.b32.xlu0 %v628, 96
    %v667 = vpop.permute.xlu0 %666
    %668 = vrot.lane.b32.xlu0 %v629, 96
    %v669 = vpop.permute.xlu0 %668
    %670 = vrot.lane.b32.xlu0 %v630, 96
    %v671 = vpop.permute.xlu0 %670
    %672 = vrot.lane.b32.xlu0 %v631, 96
    %v673 = vpop.permute.xlu0 %672
    %674 = vrot.lane.b32.xlu0 %v632, 96
    %v675 = vpop.permute.xlu0 %674
    %676 = vrot.lane.b32.xlu0 %v633, 96
    %v677 = vpop.permute.xlu0 %676
    %678 = vrot.lane.b32.xlu0 %v634, 96
    %v679 = vpop.permute.xlu0 %678
    %680 = vrot.lane.b32.xlu0 %v635, 96
    %v681 = vpop.permute.xlu0 %680
    %682 = vrot.lane.b32.xlu0 %v636, 96
    %v683 = vpop.permute.xlu0 %682
    %684 = vrot.lane.b32.xlu0 %v637, 96
    %v685 = vpop.permute.xlu0 %684
    %v686 = vrot.slane %v655, 2
    %v687 = vrot.slane %v657, 2
    %v688 = vrot.slane %v659, 2
    %v689 = vrot.slane %v661, 2
    %v690 = vrot.slane %v663, 2
    %v691 = vrot.slane %v665, 2
    %v692 = vrot.slane %v667, 2
    %v693 = vrot.slane %v669, 2
    %v694 = vrot.slane %v671, 2
    %v695 = vrot.slane %v673, 2
    %v696 = vrot.slane %v675, 2
    %v697 = vrot.slane %v677, 2
    %v698 = vrot.slane %v679, 2
    %v699 = vrot.slane %v681, 2
    %v700 = vrot.slane %v683, 2
    %v701 = vrot.slane %v685, 2
    %vm702 = vcmask 785408
    %v703 = vsel %vm702, %v655, %v686
    %v704 = vsel %vm702, %v657, %v687
    %v705 = vsel %vm702, %v659, %v688
    %v706 = vsel %vm702, %v661, %v689
    %v707 = vsel %vm702, %v663, %v690
    %v708 = vsel %vm702, %v665, %v691
    %v709 = vsel %vm702, %v667, %v692
    %v710 = vsel %vm702, %v669, %v693
    %v711 = vsel %vm702, %v671, %v694
    %v712 = vsel %vm702, %v673, %v695
    %v713 = vsel %vm702, %v675, %v696
    %v714 = vsel %vm702, %v677, %v697
    %v715 = vsel %vm702, %v679, %v698
    %v716 = vsel %vm702, %v681, %v699
    %v717 = vsel %vm702, %v683, %v700
    %v718 = vsel %vm702, %v685, %v701
    %v735 = vmax.f32 %v622, %v703
    %v736 = vmax.f32 %v623, %v704
    %v737 = vmax.f32 %v624, %v705
    %v738 = vmax.f32 %v625, %v706
    %v739 = vmax.f32 %v626, %v707
    %v740 = vmax.f32 %v627, %v708
    %v741 = vmax.f32 %v628, %v709
    %v742 = vmax.f32 %v629, %v710
    %v743 = vmax.f32 %v630, %v711
    %v744 = vmax.f32 %v631, %v712
    %v745 = vmax.f32 %v632, %v713
    %v746 = vmax.f32 %v633, %v714
    %v747 = vmax.f32 %v634, %v715
    %v748 = vmax.f32 %v635, %v716
    %v749 = vmax.f32 %v636, %v717
    %v750 = vmax.f32 %v637, %v718
    %v751 = vld [vmem:[%s2] sm:$0xf]
    %v753 = vperm.slane %v751, 0
    %v754 = vperm.slane %v751, 1
    %v755 = vperm.slane %v751, 2
    %v756 = vperm.slane %v751, 3
    %v757 = vrot.slane %v754, 6
    %v758 = vrot.slane %v755, 4
    %v759 = vrot.slane %v756, 2
    %v760 = vsel %vm492, %v753, %v757
    %v761 = vsel %vm494, %v758, %v759
    %v762 = vsel %vm496, %v760, %v761
    %v763 = vsel %vm498, %v753, %v757
    %v764 = vsel %vm500, %v759, %v758
    %v765 = vsel %vm502, %v763, %v764
    %v766 = vrot.slane %v765, 2
    %v767 = vsel %vm494, %v753, %v757
    %v768 = vsel %vm492, %v758, %v759
    %v769 = vsel %vm496, %v768, %v767
    %v770 = vrot.slane %v769, 4
    %v771 = vsel %vm500, %v757, %v753
    %v772 = vsel %vm498, %v758, %v759
    %v773 = vsel %vm502, %v772, %v771
    %v774 = vrot.slane %v773, 6
    %v775 = vrot.slane %v762, 1
    %v776 = vrot.slane %v766, 1
    %v777 = vrot.slane %v770, 1
    %v778 = vrot.slane %v774, 1
    %v787 = vadd.f32 %v735, %v762
    %v788 = vadd.f32 %v736, %v775
    %v789 = vadd.f32 %v737, %v766
    %v790 = vadd.f32 %v738, %v776
    %v791 = vadd.f32 %v739, %v770
    %v792 = vadd.f32 %v740, %v777
    %v793 = vadd.f32 %v741, %v774
    %v794 = vadd.f32 %v742, %v778
    %v795 = vadd.f32 %v743, %v762
    %v796 = vadd.f32 %v744, %v775
    %v797 = vadd.f32 %v745, %v766
    %v798 = vadd.f32 %v746, %v776
    %v799 = vadd.f32 %v747, %v770
    %v800 = vadd.f32 %v748, %v777
    %v801 = vadd.f32 %v749, %v774
    %v802 = vadd.f32 %v750, %v778
    %v803 = vtanh.pop %v787
    %v804 = vtanh.pop %v788
    %v805 = vtanh.pop %v789
    %v806 = vtanh.pop %v790
    %v807 = vtanh.pop %v791
    %v808 = vtanh.pop %v792
    %v809 = vtanh.pop %v793
    %v810 = vtanh.pop %v794
    %v811 = vtanh.pop %v795
    %v812 = vtanh.pop %v796
    %v813 = vtanh.pop %v797
    %v814 = vtanh.pop %v798
    %v815 = vtanh.pop %v799
    %v816 = vtanh.pop %v800
    %v817 = vtanh.pop %v801
    %v818 = vtanh.pop %v802
    %v835 = vperm.slane %v803, 0
    %v836 = vperm.slane %v803, 2
    %v837 = vperm.slane %v803, 4
    %v838 = vperm.slane %v803, 6
    %v839 = vperm.slane %v804, 0
    %v840 = vperm.slane %v804, 2
    %v841 = vperm.slane %v804, 4
    %v842 = vperm.slane %v804, 6
    %v843 = vperm.slane %v805, 0
    %v844 = vperm.slane %v805, 2
    %v845 = vperm.slane %v805, 4
    %v846 = vperm.slane %v805, 6
    %v847 = vperm.slane %v806, 0
    %v848 = vperm.slane %v806, 2
    %v849 = vperm.slane %v806, 4
    %v850 = vperm.slane %v806, 6
    %v851 = vperm.slane %v807, 0
    %v852 = vperm.slane %v807, 2
    %v853 = vperm.slane %v807, 4
    %v854 = vperm.slane %v807, 6
    %v855 = vperm.slane %v808, 0
    %v856 = vperm.slane %v808, 2
    %v857 = vperm.slane %v808, 4
    %v858 = vperm.slane %v808, 6
    %v859 = vperm.slane %v809, 0
    %v860 = vperm.slane %v809, 2
    %v861 = vperm.slane %v809, 4
    %v862 = vperm.slane %v809, 6
    %v863 = vperm.slane %v810, 0
    %v864 = vperm.slane %v810, 2
    %v865 = vperm.slane %v810, 4
    %v866 = vperm.slane %v810, 6
    %v867 = vperm.slane %v811, 0
    %v868 = vperm.slane %v811, 2
    %v869 = vperm.slane %v811, 4
    %v870 = vperm.slane %v811, 6
    %v871 = vperm.slane %v812, 0
    %v872 = vperm.slane %v812, 2
    %v873 = vperm.slane %v812, 4
    %v874 = vperm.slane %v812, 6
    %v875 = vperm.slane %v813, 0
    %v876 = vperm.slane %v813, 2
    %v877 = vperm.slane %v813, 4
    %v878 = vperm.slane %v813, 6
    %v879 = vperm.slane %v814, 0
    %v880 = vperm.slane %v814, 2
    %v881 = vperm.slane %v814, 4
    %v882 = vperm.slane %v814, 6
    %v883 = vperm.slane %v815, 0
    %v884 = vperm.slane %v815, 2
    %v885 = vperm.slane %v815, 4
    %v886 = vperm.slane %v815, 6
    %v887 = vperm.slane %v816, 0
    %v888 = vperm.slane %v816, 2
    %v889 = vperm.slane %v816, 4
    %v890 = vperm.slane %v816, 6
    %v891 = vperm.slane %v817, 0
    %v892 = vperm.slane %v817, 2
    %v893 = vperm.slane %v817, 4
    %v894 = vperm.slane %v817, 6
    %v895 = vperm.slane %v818, 0
    %v896 = vperm.slane %v818, 2
    %v897 = vperm.slane %v818, 4
    %v898 = vperm.slane %v818, 6
    %v963 = vpack.c.bf16 %v836, %v835
    %v964 = vpack.c.bf16 %v838, %v837
    %v965 = vpack.c.bf16 %v840, %v839
    %v966 = vpack.c.bf16 %v842, %v841
    %v967 = vpack.c.bf16 %v844, %v843
    %v968 = vpack.c.bf16 %v846, %v845
    %v969 = vpack.c.bf16 %v848, %v847
    %v970 = vpack.c.bf16 %v850, %v849
    %v971 = vpack.c.bf16 %v852, %v851
    %v972 = vpack.c.bf16 %v854, %v853
    %v973 = vpack.c.bf16 %v856, %v855
    %v974 = vpack.c.bf16 %v858, %v857
    %v975 = vpack.c.bf16 %v860, %v859
    %v976 = vpack.c.bf16 %v862, %v861
    %v977 = vpack.c.bf16 %v864, %v863
    %v978 = vpack.c.bf16 %v866, %v865
    %v979 = vpack.c.bf16 %v868, %v867
    %v980 = vpack.c.bf16 %v870, %v869
    %v981 = vpack.c.bf16 %v872, %v871
    %v982 = vpack.c.bf16 %v874, %v873
    %v983 = vpack.c.bf16 %v876, %v875
    %v984 = vpack.c.bf16 %v878, %v877
    %v985 = vpack.c.bf16 %v880, %v879
    %v986 = vpack.c.bf16 %v882, %v881
    %v987 = vpack.c.bf16 %v884, %v883
    %v988 = vpack.c.bf16 %v886, %v885
    %v989 = vpack.c.bf16 %v888, %v887
    %v990 = vpack.c.bf16 %v890, %v889
    %v991 = vpack.c.bf16 %v892, %v891
    %v992 = vpack.c.bf16 %v894, %v893
    %v993 = vpack.c.bf16 %v896, %v895
    %v994 = vpack.c.bf16 %v898, %v897
    %v1027 = vunpack.c.l.b16 %v963
    %v1028 = vunpack.c.h.b16 %v963
    %v1029 = vunpack.c.l.b16 %v964
    %v1030 = vunpack.c.h.b16 %v964
    %v1031 = vunpack.c.l.b16 %v965
    %v1032 = vunpack.c.h.b16 %v965
    %v1033 = vunpack.c.l.b16 %v966
    %v1034 = vunpack.c.h.b16 %v966
    %v1035 = vunpack.c.l.b16 %v967
    %v1036 = vunpack.c.h.b16 %v967
    %v1037 = vunpack.c.l.b16 %v968
    %v1038 = vunpack.c.h.b16 %v968
    %v1039 = vunpack.c.l.b16 %v969
    %v1040 = vunpack.c.h.b16 %v969
    %v1041 = vunpack.c.l.b16 %v970
    %v1042 = vunpack.c.h.b16 %v970
    %v1043 = vunpack.c.l.b16 %v971
    %v1044 = vunpack.c.h.b16 %v971
    %v1045 = vunpack.c.l.b16 %v972
    %v1046 = vunpack.c.h.b16 %v972
    %v1047 = vunpack.c.l.b16 %v973
    %v1048 = vunpack.c.h.b16 %v973
    %v1049 = vunpack.c.l.b16 %v974
    %v1050 = vunpack.c.h.b16 %v974
    %v1051 = vunpack.c.l.b16 %v975
    %v1052 = vunpack.c.h.b16 %v975
    %v1053 = vunpack.c.l.b16 %v976
    %v1054 = vunpack.c.h.b16 %v976
    %v1055 = vunpack.c.l.b16 %v977
    %v1056 = vunpack.c.h.b16 %v977
    %v1057 = vunpack.c.l.b16 %v978
    %v1058 = vunpack.c.h.b16 %v978
    %v1059 = vunpack.c.l.b16 %v979
    %v1060 = vunpack.c.h.b16 %v979
    %v1061 = vunpack.c.l.b16 %v980
    %v1062 = vunpack.c.h.b16 %v980
    %v1063 = vunpack.c.l.b16 %v981
    %v1064 = vunpack.c.h.b16 %v981
    %v1065 = vunpack.c.l.b16 %v982
    %v1066 = vunpack.c.h.b16 %v982
    %v1067 = vunpack.c.l.b16 %v983
    %v1068 = vunpack.c.h.b16 %v983
    %v1069 = vunpack.c.l.b16 %v984
    %v1070 = vunpack.c.h.b16 %v984
    %v1071 = vunpack.c.l.b16 %v985
    %v1072 = vunpack.c.h.b16 %v985
    %v1073 = vunpack.c.l.b16 %v986
    %v1074 = vunpack.c.h.b16 %v986
    %v1075 = vunpack.c.l.b16 %v987
    %v1076 = vunpack.c.h.b16 %v987
    %v1077 = vunpack.c.l.b16 %v988
    %v1078 = vunpack.c.h.b16 %v988
    %v1079 = vunpack.c.l.b16 %v989
    %v1080 = vunpack.c.h.b16 %v989
    %v1081 = vunpack.c.l.b16 %v990
    %v1082 = vunpack.c.h.b16 %v990
    %v1083 = vunpack.c.l.b16 %v991
    %v1084 = vunpack.c.h.b16 %v991
    %v1085 = vunpack.c.l.b16 %v992
    %v1086 = vunpack.c.h.b16 %v992
    %v1087 = vunpack.c.l.b16 %v993
    %v1088 = vunpack.c.h.b16 %v993
    %v1089 = vunpack.c.l.b16 %v994
    %v1090 = vunpack.c.h.b16 %v994
    %v1091 = vpack.c.b16 %v1027, %v1027
    %v1092 = vpack.c.b16 %v1028, %v1028
    %v1093 = vpack.c.b16 %v1029, %v1029
    %v1094 = vpack.c.b16 %v1030, %v1030
    %v1095 = vpack.c.b16 %v1031, %v1031
    %v1096 = vpack.c.b16 %v1032, %v1032
    %v1097 = vpack.c.b16 %v1033, %v1033
    %v1098 = vpack.c.b16 %v1034, %v1034
    %v1099 = vpack.c.b16 %v1035, %v1035
    %v1100 = vpack.c.b16 %v1036, %v1036
    %v1101 = vpack.c.b16 %v1037, %v1037
    %v1102 = vpack.c.b16 %v1038, %v1038
    %v1103 = vpack.c.b16 %v1039, %v1039
    %v1104 = vpack.c.b16 %v1040, %v1040
    %v1105 = vpack.c.b16 %v1041, %v1041
    %v1106 = vpack.c.b16 %v1042, %v1042
    %v1107 = vpack.c.b16 %v1043, %v1043
    %v1108 = vpack.c.b16 %v1044, %v1044
    %v1109 = vpack.c.b16 %v1045, %v1045
    %v1110 = vpack.c.b16 %v1046, %v1046
    %v1111 = vpack.c.b16 %v1047, %v1047
    %v1112 = vpack.c.b16 %v1048, %v1048
    %v1113 = vpack.c.b16 %v1049, %v1049
    %v1114 = vpack.c.b16 %v1050, %v1050
    %v1115 = vpack.c.b16 %v1051, %v1051
    %v1116 = vpack.c.b16 %v1052, %v1052
    %v1117 = vpack.c.b16 %v1053, %v1053
    %v1118 = vpack.c.b16 %v1054, %v1054
    %v1119 = vpack.c.b16 %v1055, %v1055
    %v1120 = vpack.c.b16 %v1056, %v1056
    %v1121 = vpack.c.b16 %v1057, %v1057
    %v1122 = vpack.c.b16 %v1058, %v1058
    %v1123 = vpack.c.b16 %v1059, %v1059
    %v1124 = vpack.c.b16 %v1060, %v1060
    %v1125 = vpack.c.b16 %v1061, %v1061
    %v1126 = vpack.c.b16 %v1062, %v1062
    %v1127 = vpack.c.b16 %v1063, %v1063
    %v1128 = vpack.c.b16 %v1064, %v1064
    %v1129 = vpack.c.b16 %v1065, %v1065
    %v1130 = vpack.c.b16 %v1066, %v1066
    %v1131 = vpack.c.b16 %v1067, %v1067
    %v1132 = vpack.c.b16 %v1068, %v1068
    %v1133 = vpack.c.b16 %v1069, %v1069
    %v1134 = vpack.c.b16 %v1070, %v1070
    %v1135 = vpack.c.b16 %v1071, %v1071
    %v1136 = vpack.c.b16 %v1072, %v1072
    %v1137 = vpack.c.b16 %v1073, %v1073
    %v1138 = vpack.c.b16 %v1074, %v1074
    %v1139 = vpack.c.b16 %v1075, %v1075
    %v1140 = vpack.c.b16 %v1076, %v1076
    %v1141 = vpack.c.b16 %v1077, %v1077
    %v1142 = vpack.c.b16 %v1078, %v1078
    %v1143 = vpack.c.b16 %v1079, %v1079
    %v1144 = vpack.c.b16 %v1080, %v1080
    %v1145 = vpack.c.b16 %v1081, %v1081
    %v1146 = vpack.c.b16 %v1082, %v1082
    %v1147 = vpack.c.b16 %v1083, %v1083
    %v1148 = vpack.c.b16 %v1084, %v1084
    %v1149 = vpack.c.b16 %v1085, %v1085
    %v1150 = vpack.c.b16 %v1086, %v1086
    %v1151 = vpack.c.b16 %v1087, %v1087
    %v1152 = vpack.c.b16 %v1088, %v1088
    %v1153 = vpack.c.b16 %v1089, %v1089
    %v1154 = vpack.c.b16 %v1090, %v1090
    %v1155 = vunpack.c.l.b16 %v1091
    %v1156 = vunpack.c.l.b16 %v1092
    %v1157 = vunpack.c.l.b16 %v1093
    %v1158 = vunpack.c.l.b16 %v1094
    %v1159 = vunpack.c.l.b16 %v1095
    %v1160 = vunpack.c.l.b16 %v1096
    %v1161 = vunpack.c.l.b16 %v1097
    %v1162 = vunpack.c.l.b16 %v1098
    %v1163 = vunpack.c.l.b16 %v1099
    %v1164 = vunpack.c.l.b16 %v1100
    %v1165 = vunpack.c.l.b16 %v1101
    %v1166 = vunpack.c.l.b16 %v1102
    %v1167 = vunpack.c.l.b16 %v1103
    %v1168 = vunpack.c.l.b16 %v1104
    %v1169 = vunpack.c.l.b16 %v1105
    %v1170 = vunpack.c.l.b16 %v1106
    %v1171 = vunpack.c.l.b16 %v1107
    %v1172 = vunpack.c.l.b16 %v1108
    %v1173 = vunpack.c.l.b16 %v1109
    %v1174 = vunpack.c.l.b16 %v1110
    %v1175 = vunpack.c.l.b16 %v1111
    %v1176 = vunpack.c.l.b16 %v1112
    %v1177 = vunpack.c.l.b16 %v1113
    %v1178 = vunpack.c.l.b16 %v1114
    %v1179 = vunpack.c.l.b16 %v1115
    %v1180 = vunpack.c.l.b16 %v1116
    %v1181 = vunpack.c.l.b16 %v1117
    %v1182 = vunpack.c.l.b16 %v1118
    %v1183 = vunpack.c.l.b16 %v1119
    %v1184 = vunpack.c.l.b16 %v1120
    %v1185 = vunpack.c.l.b16 %v1121
    %v1186 = vunpack.c.l.b16 %v1122
    %v1187 = vunpack.c.l.b16 %v1123
    %v1188 = vunpack.c.l.b16 %v1124
    %v1189 = vunpack.c.l.b16 %v1125
    %v1190 = vunpack.c.l.b16 %v1126
    %v1191 = vunpack.c.l.b16 %v1127
    %v1192 = vunpack.c.l.b16 %v1128
    %v1193 = vunpack.c.l.b16 %v1129
    %v1194 = vunpack.c.l.b16 %v1130
    %v1195 = vunpack.c.l.b16 %v1131
    %v1196 = vunpack.c.l.b16 %v1132
    %v1197 = vunpack.c.l.b16 %v1133
    %v1198 = vunpack.c.l.b16 %v1134
    %v1199 = vunpack.c.l.b16 %v1135
    %v1200 = vunpack.c.l.b16 %v1136
    %v1201 = vunpack.c.l.b16 %v1137
    %v1202 = vunpack.c.l.b16 %v1138
    %v1203 = vunpack.c.l.b16 %v1139
    %v1204 = vunpack.c.l.b16 %v1140
    %v1205 = vunpack.c.l.b16 %v1141
    %v1206 = vunpack.c.l.b16 %v1142
    %v1207 = vunpack.c.l.b16 %v1143
    %v1208 = vunpack.c.l.b16 %v1144
    %v1209 = vunpack.c.l.b16 %v1145
    %v1210 = vunpack.c.l.b16 %v1146
    %v1211 = vunpack.c.l.b16 %v1147
    %v1212 = vunpack.c.l.b16 %v1148
    %v1213 = vunpack.c.l.b16 %v1149
    %v1214 = vunpack.c.l.b16 %v1150
    %v1215 = vunpack.c.l.b16 %v1151
    %v1216 = vunpack.c.l.b16 %v1152
    %v1217 = vunpack.c.l.b16 %v1153
    %v1218 = vunpack.c.l.b16 %v1154
    %v1219 = vrot.slane %v1155, 7
    %v1220 = vrot.slane %v1159, 6
    %vm1221 = vcmask 1042434
    %v1222 = vsel %vm1221, %v1220, %v1219
    %v1223 = vrot.slane %v1163, 5
    %vm1224 = vcmask 1043459
    %v1225 = vsel %vm1224, %v1223, %v1222
    %v1226 = vrot.slane %v1167, 4
    %vm1227 = vcmask 1044484
    %v1228 = vsel %vm1227, %v1226, %v1225
    %v1229 = vrot.slane %v1171, 3
    %vm1230 = vcmask 1045509
    %v1231 = vsel %vm1230, %v1229, %v1228
    %v1232 = vrot.slane %v1175, 2
    %vm1233 = vcmask 1046534
    %v1234 = vsel %vm1233, %v1232, %v1231
    %v1235 = vrot.slane %v1179, 1
    %vm1236 = vcmask 1047559
    %v1237 = vsel %vm1236, %v1235, %v1234
    %v1238 = vrot.slane %v1156, 7
    %v1239 = vrot.slane %v1160, 6
    %v1240 = vsel %vm1221, %v1239, %v1238
    %v1241 = vrot.slane %v1164, 5
    %v1242 = vsel %vm1224, %v1241, %v1240
    %v1243 = vrot.slane %v1168, 4
    %v1244 = vsel %vm1227, %v1243, %v1242
    %v1245 = vrot.slane %v1172, 3
    %v1246 = vsel %vm1230, %v1245, %v1244
    %v1247 = vrot.slane %v1176, 2
    %v1248 = vsel %vm1233, %v1247, %v1246
    %v1249 = vrot.slane %v1180, 1
    %v1250 = vsel %vm1236, %v1249, %v1248
    %v1251 = vrot.slane %v1157, 7
    %v1252 = vrot.slane %v1161, 6
    %v1253 = vsel %vm1221, %v1252, %v1251
    %v1254 = vrot.slane %v1165, 5
    %v1255 = vsel %vm1224, %v1254, %v1253
    %v1256 = vrot.slane %v1169, 4
    %v1257 = vsel %vm1227, %v1256, %v1255
    %v1258 = vrot.slane %v1173, 3
    %v1259 = vsel %vm1230, %v1258, %v1257
    %v1260 = vrot.slane %v1177, 2
    %v1261 = vsel %vm1233, %v1260, %v1259
    %v1262 = vrot.slane %v1181, 1
    %v1263 = vsel %vm1236, %v1262, %v1261
    %v1264 = vrot.slane %v1158, 7
    %v1265 = vrot.slane %v1162, 6
    %v1266 = vsel %vm1221, %v1265, %v1264
    %v1267 = vrot.slane %v1166, 5
    %v1268 = vsel %vm1224, %v1267, %v1266
    %v1269 = vrot.slane %v1170, 4
    %v1270 = vsel %vm1227, %v1269, %v1268
    %v1271 = vrot.slane %v1174, 3
    %v1272 = vsel %vm1230, %v1271, %v1270
    %v1273 = vrot.slane %v1178, 2
    %v1274 = vsel %vm1233, %v1273, %v1272
    %v1275 = vrot.slane %v1182, 1
    %v1276 = vsel %vm1236, %v1275, %v1274
    %v1277 = vrot.slane %v1187, 7
    %v1278 = vrot.slane %v1191, 6
    %v1279 = vsel %vm1221, %v1278, %v1277
    %v1280 = vrot.slane %v1195, 5
    %v1281 = vsel %vm1224, %v1280, %v1279
    %v1282 = vrot.slane %v1199, 4
    %v1283 = vsel %vm1227, %v1282, %v1281
    %v1284 = vrot.slane %v1203, 3
    %v1285 = vsel %vm1230, %v1284, %v1283
    %v1286 = vrot.slane %v1207, 2
    %v1287 = vsel %vm1233, %v1286, %v1285
    %v1288 = vrot.slane %v1211, 1
    %v1289 = vsel %vm1236, %v1288, %v1287
    %v1290 = vrot.slane %v1188, 7
    %v1291 = vrot.slane %v1192, 6
    %v1292 = vsel %vm1221, %v1291, %v1290
    %v1293 = vrot.slane %v1196, 5
    %v1294 = vsel %vm1224, %v1293, %v1292
    %v1295 = vrot.slane %v1200, 4
    %v1296 = vsel %vm1227, %v1295, %v1294
    %v1297 = vrot.slane %v1204, 3
    %v1298 = vsel %vm1230, %v1297, %v1296
    %v1299 = vrot.slane %v1208, 2
    %v1300 = vsel %vm1233, %v1299, %v1298
    %v1301 = vrot.slane %v1212, 1
    %v1302 = vsel %vm1236, %v1301, %v1300
    %v1303 = vrot.slane %v1189, 7
    %v1304 = vrot.slane %v1193, 6
    %v1305 = vsel %vm1221, %v1304, %v1303
    %v1306 = vrot.slane %v1197, 5
    %v1307 = vsel %vm1224, %v1306, %v1305
    %v1308 = vrot.slane %v1201, 4
    %v1309 = vsel %vm1227, %v1308, %v1307
    %v1310 = vrot.slane %v1205, 3
    %v1311 = vsel %vm1230, %v1310, %v1309
    %v1312 = vrot.slane %v1209, 2
    %v1313 = vsel %vm1233, %v1312, %v1311
    %v1314 = vrot.slane %v1213, 1
    %v1315 = vsel %vm1236, %v1314, %v1313
    %v1316 = vrot.slane %v1190, 7
    %v1317 = vrot.slane %v1194, 6
    %v1318 = vsel %vm1221, %v1317, %v1316
    %v1319 = vrot.slane %v1198, 5
    %v1320 = vsel %vm1224, %v1319, %v1318
    %v1321 = vrot.slane %v1202, 4
    %v1322 = vsel %vm1227, %v1321, %v1320
    %v1323 = vrot.slane %v1206, 3
    %v1324 = vsel %vm1230, %v1323, %v1322
    %v1325 = vrot.slane %v1210, 2
    %v1326 = vsel %vm1233, %v1325, %v1324
    %v1327 = vrot.slane %v1214, 1
    %v1328 = vsel %vm1236, %v1327, %v1326
    %v1329 = vpack.c.b16 %v1183, %v1237
    %v1330 = vpack.c.b16 %v1184, %v1250
    %v1331 = vpack.c.b16 %v1185, %v1263
    %v1332 = vpack.c.b16 %v1186, %v1276
    %v1333 = vpack.c.b16 %v1215, %v1289
    %v1334 = vpack.c.b16 %v1216, %v1302
    %v1335 = vpack.c.b16 %v1217, %v1315
    %v1336 = vpack.c.b16 %v1218, %v1328
    %v1345 = vsel %vm88, 0, %v1329
    %v1346 = vsel %vm88, 0, %v1330
    %v1347 = vsel %vm88, 0, %v1331
    %v1348 = vsel %vm88, 0, %v1332
    %v1349 = vsel %vm88, 0, %v1333
    %v1350 = vsel %vm88, 0, %v1334
    %v1351 = vsel %vm88, 0, %v1335
    %v1352 = vsel %vm88, 0, %v1336
    %vm1353 = vcmask 1044480
    %vm1354 = vsmask.f32 4352
    %vm1355 = vmand %vm1353, %vm1354
    %v1356 = vsel %vm1355, %v1345, 0
    %v1357 = vsel %vm1355, %v1346, 0
    %v1358 = vsel %vm1355, %v1347, 0
    %v1359 = vsel %vm1355, %v1348, 0
    %v1360 = vsel %vm1355, %v1349, 0
    %v1361 = vsel %vm1355, %v1350, 0
    %v1362 = vsel %vm1355, %v1351, 0
    %v1363 = vsel %vm1355, %v1352, 0
    %v1372 = vunpack.c.l.b16 %v1356
    %v1373 = vunpack.c.l.b16 %v1357
    %v1374 = vunpack.c.l.b16 %v1358
    %v1375 = vunpack.c.l.b16 %v1359
    %v1376 = vunpack.c.l.b16 %v1360
    %v1377 = vunpack.c.l.b16 %v1361
    %v1378 = vunpack.c.l.b16 %v1362
    %v1379 = vunpack.c.l.b16 %v1363
    %v1380 = vld [vmem:[#allocation2] sm:$0xf]
    %v1381 = vld [vmem:[#allocation2 + $0x4] sm:$0xf]
    %v1382 = vld [vmem:[#allocation2 + $0x8] sm:$0xf]
    %v1383 = vld [vmem:[#allocation2 + $0xc] sm:$0xf]
    %v1384 = vld [vmem:[#allocation2 + $0x10] sm:$0xf]
    %v1385 = vld [vmem:[#allocation2 + $0x14] sm:$0xf]
    %v1386 = vld [vmem:[#allocation2 + $0x18] sm:$0xf]
    %v1387 = vld [vmem:[#allocation2 + $0x1c] sm:$0xf]
    %v1388 = vld [vmem:[#allocation2 + $0x20] sm:$0xf]
    %v1389 = vld [vmem:[#allocation2 + $0x24] sm:$0xf]
    %v1390 = vld [vmem:[#allocation2 + $0x28] sm:$0xf]
    %v1391 = vld [vmem:[#allocation2 + $0x2c] sm:$0xf]
    %v1392 = vld [vmem:[#allocation2 + $0x30] sm:$0xf]
    %v1393 = vld [vmem:[#allocation2 + $0x34] sm:$0xf]
    %v1394 = vld [vmem:[#allocation2 + $0x38] sm:$0xf]
    %v1395 = vld [vmem:[#allocation2 + $0x3c] sm:$0xf]
    %v1396 = vld [vmem:[#allocation2 + $0x40] sm:$0xf]
    %v1397 = vld [vmem:[#allocation2 + $0x44] sm:$0xf]
    %v1398 = vld [vmem:[#allocation2 + $0x48] sm:$0xf]
    %v1399 = vld [vmem:[#allocation2 + $0x4c] sm:$0xf]
    %v1400 = vld [vmem:[#allocation2 + $0x50] sm:$0xf]
    %v1401 = vld [vmem:[#allocation2 + $0x54] sm:$0xf]
    %v1402 = vld [vmem:[#allocation2 + $0x58] sm:$0xf]
    %v1403 = vld [vmem:[#allocation2 + $0x5c] sm:$0xf]
    %v1404 = vld [vmem:[#allocation2 + $0x60] sm:$0xf]
    %v1405 = vld [vmem:[#allocation2 + $0x64] sm:$0xf]
    %v1406 = vld [vmem:[#allocation2 + $0x68] sm:$0xf]
    %v1407 = vld [vmem:[#allocation2 + $0x6c] sm:$0xf]
    %v1408 = vld [vmem:[#allocation2 + $0x70] sm:$0xf]
    %v1409 = vld [vmem:[#allocation2 + $0x74] sm:$0xf]
    %v1410 = vld [vmem:[#allocation2 + $0x78] sm:$0xf]
    %v1411 = vld [vmem:[#allocation2 + $0x7c] sm:$0xf]
    %v1412 = vld [vmem:[#allocation2 + $0x80] sm:$0xf]
    %v1413 = vld [vmem:[#allocation2 + $0x84] sm:$0xf]
    %v1414 = vld [vmem:[#allocation2 + $0x88] sm:$0xf]
    %v1415 = vld [vmem:[#allocation2 + $0x8c] sm:$0xf]
    %v1416 = vld [vmem:[#allocation2 + $0x90] sm:$0xf]
    %v1417 = vld [vmem:[#allocation2 + $0x94] sm:$0xf]
    %v1418 = vld [vmem:[#allocation2 + $0x98] sm:$0xf]
    %v1419 = vld [vmem:[#allocation2 + $0x9c] sm:$0xf]
    %v1420 = vld [vmem:[#allocation2 + $0xa0] sm:$0xf]
    %v1421 = vld [vmem:[#allocation2 + $0xa4] sm:$0xf]
    %v1422 = vld [vmem:[#allocation2 + $0xa8] sm:$0xf]
    %v1423 = vld [vmem:[#allocation2 + $0xac] sm:$0xf]
    %v1424 = vld [vmem:[#allocation2 + $0xb0] sm:$0xf]
    %v1425 = vld [vmem:[#allocation2 + $0xb4] sm:$0xf]
    %v1426 = vld [vmem:[#allocation2 + $0xb8] sm:$0xf]
    %v1427 = vld [vmem:[#allocation2 + $0xbc] sm:$0xf]
    %v1428 = vld [vmem:[#allocation2 + $0xc0] sm:$0xf]
    %v1429 = vld [vmem:[#allocation2 + $0xc4] sm:$0xf]
    %v1430 = vld [vmem:[#allocation2 + $0xc8] sm:$0xf]
    %v1431 = vld [vmem:[#allocation2 + $0xcc] sm:$0xf]
    %v1432 = vld [vmem:[#allocation2 + $0xd0] sm:$0xf]
    %v1433 = vld [vmem:[#allocation2 + $0xd4] sm:$0xf]
    %v1434 = vld [vmem:[#allocation2 + $0xd8] sm:$0xf]
    %v1435 = vld [vmem:[#allocation2 + $0xdc] sm:$0xf]
    %v1436 = vld [vmem:[#allocation2 + $0xe0] sm:$0xf]
    %v1437 = vld [vmem:[#allocation2 + $0xe4] sm:$0xf]
    %v1438 = vld [vmem:[#allocation2 + $0xe8] sm:$0xf]
    %v1439 = vld [vmem:[#allocation2 + $0xec] sm:$0xf]
    %v1440 = vunpack.c.h.b16 %v1356
    %v1441 = vunpack.c.h.b16 %v1357
    %v1442 = vunpack.c.h.b16 %v1358
    %v1443 = vunpack.c.h.b16 %v1359
    %v1444 = vunpack.c.h.b16 %v1360
    %v1445 = vunpack.c.h.b16 %v1361
    %v1446 = vunpack.c.h.b16 %v1362
    %v1447 = vunpack.c.h.b16 %v1363
    %v1448 = vpack.c.b16 %v1373, %v1372
    %v1449 = vpack.c.b16 %v1375, %v1374
    %v1450 = vpack.c.b16 %v1441, %v1440
    %v1451 = vpack.c.b16 %v1443, %v1442
    %v1452 = vpack.c.b16 %v1377, %v1376
    %v1453 = vpack.c.b16 %v1379, %v1378
    %v1454 = vpack.c.b16 %v1445, %v1444
    %v1455 = vpack.c.b16 %v1447, %v1446
    %vm1456 = vsmask.f32 3328
    %vm1457 = vsmask.f32 7440
    %vm1458 = vmor %vm1456, %vm1457
    %v1460 = vshrl.u32 %v1448, 16
    %v1462 = vrot.slane %v1460, 4
    %v1463 = vshll.u32 %v1448, 16
    %v1465 = vrot.slane %v1463, 5
    %v1466 = vor.u32 %v1462, %v1465
    %v1467 = vrot.slane %v1466, 4
    %v1469 = vshll.u32 %v1450, 16
    %v1471 = vrot.slane %v1469, 5
    %v1472 = vsel %vm1458, %v1467, %v1471
    %v1474 = vshrl.u32 %v1449, 16
    %v1476 = vrot.slane %v1474, 4
    %v1477 = vshll.u32 %v1449, 16
    %v1479 = vrot.slane %v1477, 5
    %v1480 = vor.u32 %v1476, %v1479
    %v1481 = vrot.slane %v1480, 4
    %v1483 = vshll.u32 %v1451, 16
    %v1485 = vrot.slane %v1483, 5
    %v1486 = vsel %vm1458, %v1481, %v1485
    %v1488 = vshrl.u32 %v1452, 16
    %v1490 = vrot.slane %v1488, 4
    %v1491 = vshll.u32 %v1452, 16
    %v1493 = vrot.slane %v1491, 5
    %v1494 = vor.u32 %v1490, %v1493
    %v1495 = vrot.slane %v1494, 4
    %v1497 = vshll.u32 %v1454, 16
    %v1499 = vrot.slane %v1497, 5
    %v1500 = vsel %vm1458, %v1495, %v1499
    %v1502 = vshrl.u32 %v1453, 16
    %v1504 = vrot.slane %v1502, 4
    %v1505 = vshll.u32 %v1453, 16
    %v1507 = vrot.slane %v1505, 5
    %v1508 = vor.u32 %v1504, %v1507
    %v1509 = vrot.slane %v1508, 4
    %v1511 = vshll.u32 %v1455, 16
    %v1513 = vrot.slane %v1511, 5
    %v1514 = vsel %vm1458, %v1509, %v1513
    %s1515 = scalar_lea.vmem [#allocation2], 240
    %v1516 = vld [vmem:[%s1515] sm:$0xf]
    %v1517 = vld [vmem:[%s1515 + $0x4] sm:$0xf]
    %v1518 = vld [vmem:[%s1515 + $0x8] sm:$0xf]
    %v1519 = vld [vmem:[%s1515 + $0xc] sm:$0xf]
    %v1520 = vld [vmem:[%s1515 + $0x10] sm:$0xf]
    %v1521 = vld [vmem:[%s1515 + $0x14] sm:$0xf]
    %v1522 = vld [vmem:[%s1515 + $0x18] sm:$0xf]
    %v1523 = vld [vmem:[%s1515 + $0x1c] sm:$0xf]
    %v1524 = vld [vmem:[%s1515 + $0x20] sm:$0xf]
    %v1525 = vld [vmem:[%s1515 + $0x24] sm:$0xf]
    %v1526 = vld [vmem:[%s1515 + $0x28] sm:$0xf]
    %v1527 = vld [vmem:[%s1515 + $0x2c] sm:$0xf]
    %v1528 = vld [vmem:[%s1515 + $0x30] sm:$0xf]
    %v1529 = vld [vmem:[%s1515 + $0x34] sm:$0xf]
    %v1530 = vld [vmem:[%s1515 + $0x38] sm:$0xf]
    %v1531 = vld [vmem:[%s1515 + $0x3c] sm:$0xf]
    %v1532 = vld [vmem:[%s1515 + $0x40] sm:$0xf]
    %v1533 = vld [vmem:[%s1515 + $0x44] sm:$0xf]
    %v1534 = vld [vmem:[%s1515 + $0x48] sm:$0xf]
    %v1535 = vld [vmem:[%s1515 + $0x4c] sm:$0xf]
    %v1536 = vld [vmem:[%s1515 + $0x50] sm:$0xf]
    %v1537 = vld [vmem:[%s1515 + $0x54] sm:$0xf]
    %v1538 = vld [vmem:[%s1515 + $0x58] sm:$0xf]
    %v1539 = vld [vmem:[%s1515 + $0x5c] sm:$0xf]
    %v1540 = vld [vmem:[%s1515 + $0x60] sm:$0xf]
    %v1541 = vld [vmem:[%s1515 + $0x64] sm:$0xf]
    %v1542 = vld [vmem:[%s1515 + $0x68] sm:$0xf]
    %v1543 = vld [vmem:[%s1515 + $0x6c] sm:$0xf]
    %v1544 = vld [vmem:[%s1515 + $0x70] sm:$0xf]
    %v1545 = vld [vmem:[%s1515 + $0x74] sm:$0xf]
    %v1546 = vld [vmem:[%s1515 + $0x78] sm:$0xf]
    %v1547 = vld [vmem:[%s1515 + $0x7c] sm:$0xf]
    %v1548 = vld [vmem:[%s1515 + $0x80] sm:$0xf]
    %v1549 = vld [vmem:[%s1515 + $0x84] sm:$0xf]
    %v1550 = vld [vmem:[%s1515 + $0x88] sm:$0xf]
    %v1551 = vld [vmem:[%s1515 + $0x8c] sm:$0xf]
    %v1552 = vld [vmem:[%s1515 + $0x90] sm:$0xf]
    %v1553 = vld [vmem:[%s1515 + $0x94] sm:$0xf]
    %v1554 = vld [vmem:[%s1515 + $0x98] sm:$0xf]
    %v1555 = vld [vmem:[%s1515 + $0x9c] sm:$0xf]
    %v1556 = vld [vmem:[%s1515 + $0xa0] sm:$0xf]
    %v1557 = vld [vmem:[%s1515 + $0xa4] sm:$0xf]
    %v1558 = vld [vmem:[%s1515 + $0xa8] sm:$0xf]
    %v1559 = vld [vmem:[%s1515 + $0xac] sm:$0xf]
    %v1560 = vld [vmem:[%s1515 + $0xb0] sm:$0xf]
    %v1561 = vld [vmem:[%s1515 + $0xb4] sm:$0xf]
    %v1562 = vld [vmem:[%s1515 + $0xb8] sm:$0xf]
    %v1563 = vld [vmem:[%s1515 + $0xbc] sm:$0xf]
    %v1564 = vld [vmem:[%s1515 + $0xc0] sm:$0xf]
    %v1565 = vld [vmem:[%s1515 + $0xc4] sm:$0xf]
    %v1566 = vld [vmem:[%s1515 + $0xc8] sm:$0xf]
    %v1567 = vld [vmem:[%s1515 + $0xcc] sm:$0xf]
    %v1568 = vld [vmem:[%s1515 + $0xd0] sm:$0xf]
    %v1569 = vld [vmem:[%s1515 + $0xd4] sm:$0xf]
    %v1570 = vld [vmem:[%s1515 + $0xd8] sm:$0xf]
    %v1571 = vld [vmem:[%s1515 + $0xdc] sm:$0xf]
    %v1572 = vld [vmem:[%s1515 + $0xe0] sm:$0xf]
    %v1573 = vld [vmem:[%s1515 + $0xe4] sm:$0xf]
    %v1574 = vld [vmem:[%s1515 + $0xe8] sm:$0xf]
    %v1575 = vld [vmem:[%s1515 + $0xec] sm:$0xf]
    %v1576 = vunpack.c.l.b16 %v1472
    %v1577 = vunpack.c.h.b16 %v1472
    %v1578 = vunpack.c.l.b16 %v1486
    %v1579 = vunpack.c.h.b16 %v1486
    %v1580 = vunpack.c.l.b16 %v1500
    %v1581 = vunpack.c.h.b16 %v1500
    %v1582 = vunpack.c.l.b16 %v1514
    %v1583 = vunpack.c.h.b16 %v1514
    %v1584 = vpack.c.b16 %v1580, %v1576
    %v1585 = vpack.c.b16 %v1581, %v1577
    %v1586 = vpack.c.b16 %v1582, %v1578
    %v1587 = vpack.c.b16 %v1583, %v1579
    %v1651 = vunpack.c.l.b16 %v1516
    %v1652 = vunpack.c.l.b16 %v1517
    %v1653 = vunpack.c.l.b16 %v1518
    %v1654 = vunpack.c.l.b16 %v1519
    %v1655 = vunpack.c.l.b16 %v1520
    %v1656 = vunpack.c.l.b16 %v1521
    %v1657 = vunpack.c.l.b16 %v1522
    %v1658 = vunpack.c.l.b16 %v1523
    %v1659 = vunpack.c.l.b16 %v1524
    %v1660 = vunpack.c.l.b16 %v1525
    %v1661 = vunpack.c.l.b16 %v1526
    %v1662 = vunpack.c.l.b16 %v1527
    %v1663 = vunpack.c.l.b16 %v1528
    %v1664 = vunpack.c.l.b16 %v1529
    %v1665 = vunpack.c.l.b16 %v1530
    %v1666 = vunpack.c.l.b16 %v1531
    %v1667 = vunpack.c.l.b16 %v1532
    %v1668 = vunpack.c.l.b16 %v1533
    %v1669 = vunpack.c.l.b16 %v1534
    %v1670 = vunpack.c.l.b16 %v1535
    %v1671 = vunpack.c.l.b16 %v1536
    %v1672 = vunpack.c.l.b16 %v1537
    %v1673 = vunpack.c.l.b16 %v1538
    %v1674 = vunpack.c.l.b16 %v1539
    %v1675 = vunpack.c.l.b16 %v1540
    %v1676 = vunpack.c.l.b16 %v1541
    %v1677 = vunpack.c.l.b16 %v1542
    %v1678 = vunpack.c.l.b16 %v1543
    %v1679 = vunpack.c.l.b16 %v1544
    %v1680 = vunpack.c.l.b16 %v1545
    %v1681 = vunpack.c.l.b16 %v1546
    %v1682 = vunpack.c.l.b16 %v1547
    %v1683 = vunpack.c.l.b16 %v1548
    %v1684 = vunpack.c.l.b16 %v1549
    %v1685 = vunpack.c.l.b16 %v1550
    %v1686 = vunpack.c.l.b16 %v1551
    %v1687 = vunpack.c.l.b16 %v1552
    %v1688 = vunpack.c.l.b16 %v1553
    %v1689 = vunpack.c.l.b16 %v1554
    %v1690 = vunpack.c.l.b16 %v1555
    %v1691 = vunpack.c.l.b16 %v1556
    %v1692 = vunpack.c.l.b16 %v1557
    %v1693 = vunpack.c.l.b16 %v1558
    %v1694 = vunpack.c.l.b16 %v1559
    %v1695 = vunpack.c.l.b16 %v1560
    %v1696 = vunpack.c.l.b16 %v1561
    %v1697 = vunpack.c.l.b16 %v1562
    %v1698 = vunpack.c.l.b16 %v1563
    %v1699 = vunpack.c.l.b16 %v1564
    %v1700 = vunpack.c.l.b16 %v1565
    %v1701 = vunpack.c.l.b16 %v1566
    %v1702 = vunpack.c.l.b16 %v1567
    %v1703 = vunpack.c.l.b16 %v1568
    %v1704 = vunpack.c.l.b16 %v1569
    %v1705 = vunpack.c.l.b16 %v1570
    %v1706 = vunpack.c.l.b16 %v1571
    %v1707 = vunpack.c.l.b16 %v1572
    %v1708 = vunpack.c.l.b16 %v1573
    %v1709 = vunpack.c.l.b16 %v1574
    %v1710 = vunpack.c.l.b16 %v1575
    %v1711 = vpack.c.b16 %v1652, %v1651
    %v1712 = vpack.c.b16 %v1654, %v1653
    %v1713 = vpack.c.b16 %v1656, %v1655
    %v1714 = vpack.c.b16 %v1658, %v1657
    %v1715 = vpack.c.b16 %v1660, %v1659
    %v1716 = vpack.c.b16 %v1662, %v1661
    %v1717 = vpack.c.b16 %v1664, %v1663
    %v1718 = vpack.c.b16 %v1666, %v1665
    %v1719 = vpack.c.b16 %v1668, %v1667
    %v1720 = vpack.c.b16 %v1670, %v1669
    %v1721 = vpack.c.b16 %v1672, %v1671
    %v1722 = vpack.c.b16 %v1674, %v1673
    %v1723 = vpack.c.b16 %v1676, %v1675
    %v1724 = vpack.c.b16 %v1678, %v1677
    %v1725 = vpack.c.b16 %v1680, %v1679
    %v1726 = vpack.c.b16 %v1682, %v1681
    %v1727 = vpack.c.b16 %v1684, %v1683
    %v1728 = vpack.c.b16 %v1686, %v1685
    %v1729 = vpack.c.b16 %v1688, %v1687
    %v1730 = vpack.c.b16 %v1690, %v1689
    %v1731 = vpack.c.b16 %v1692, %v1691
    %v1732 = vpack.c.b16 %v1694, %v1693
    %v1733 = vpack.c.b16 %v1696, %v1695
    %v1734 = vpack.c.b16 %v1698, %v1697
    %v1735 = vpack.c.b16 %v1700, %v1699
    %v1736 = vpack.c.b16 %v1702, %v1701
    %v1737 = vpack.c.b16 %v1704, %v1703
    %v1738 = vpack.c.b16 %v1706, %v1705
    %v1739 = vpack.c.b16 %v1708, %v1707
    %v1740 = vpack.c.b16 %v1710, %v1709
    %v1772 = vsel %vm702, %v1587, 0
    %1774 = vmatpush.bf16.msra.mxu0 %v1718
    %1775 = vmatpush.bf16.msra.mxu0 %v1717
    %1776 = vmatpush.bf16.msra.mxu0 %v1716
    %1777 = vmatpush.bf16.msra.mxu0 %v1715
    %1778 = vmatpush.bf16.msra.mxu0 %v1714
    %1779 = vmatpush.bf16.msra.mxu0 %v1713
    %1780 = vmatpush.bf16.msra.mxu0 %v1712
    %1781 = vmatpush.bf16.msra.mxu0 %v1711
    %1782 = vmatmul.bf16.gmra.mxu0 %v1584
    %v1783 = vpop.f32.mrf.mxu0
    %v1784 = vadd.f32 0.0, %v1783
    %v1785 = vpop.f32.mrf.mxu0
    %v1786 = vadd.f32 0.0, %v1785
    %1787 = vdwg.mxu0
    %1788 = vmatpush.bf16.msra.mxu0 %v1726
    %1789 = vmatpush.bf16.msra.mxu0 %v1725
    %1790 = vmatpush.bf16.msra.mxu0 %v1724
    %1791 = vmatpush.bf16.msra.mxu0 %v1723
    %1792 = vmatpush.bf16.msra.mxu0 %v1722
    %1793 = vmatpush.bf16.msra.mxu0 %v1721
    %1794 = vmatpush.bf16.msra.mxu0 %v1720
    %1795 = vmatpush.bf16.msra.mxu0 %v1719
    %1796 = vmatmul.bf16.gmra.mxu0 %v1585
    %v1797 = vpop.f32.mrf.mxu0
    %v1798 = vadd.f32 %v1784, %v1797
    %v1799 = vpop.f32.mrf.mxu0
    %v1800 = vadd.f32 %v1786, %v1799
    %1801 = vdwg.mxu0
    %1802 = vmatpush.bf16.msra.mxu0 %v1734
    %1803 = vmatpush.bf16.msra.mxu0 %v1733
    %1804 = vmatpush.bf16.msra.mxu0 %v1732
    %1805 = vmatpush.bf16.msra.mxu0 %v1731
    %1806 = vmatpush.bf16.msra.mxu0 %v1730
    %1807 = vmatpush.bf16.msra.mxu0 %v1729
    %1808 = vmatpush.bf16.msra.mxu0 %v1728
    %1809 = vmatpush.bf16.msra.mxu0 %v1727
    %1810 = vmatmul.bf16.gmra.mxu0 %v1586
    %v1811 = vpop.f32.mrf.mxu0
    %v1812 = vadd.f32 %v1798, %v1811
    %v1813 = vpop.f32.mrf.mxu0
    %v1814 = vadd.f32 %v1800, %v1813
    %1815 = vdwg.mxu0
    %1816 = vmatpush.bf16.msra.mxu0 0
    %1817 = vmatpush.bf16.msra.mxu0 0
    %1818 = vmatpush.bf16.msra.mxu0 %v1740
    %1819 = vmatpush.bf16.msra.mxu0 %v1739
    %1820 = vmatpush.bf16.msra.mxu0 %v1738
    %1821 = vmatpush.bf16.msra.mxu0 %v1737
    %1822 = vmatpush.bf16.msra.mxu0 %v1736
    %1823 = vmatpush.bf16.msra.mxu0 %v1735
    %1824 = vmatmul.bf16.gmra.mxu0 %v1772
    %v1825 = vpop.f32.mrf.mxu0
    %v1826 = vadd.f32 %v1812, %v1825
    %v1827 = vpop.f32.mrf.mxu0
    %v1828 = vadd.f32 %v1814, %v1827
    %1829 = vdwg.mxu0
    %v1830 = vpack.c.b16 %v1376, %v1372
    %v1831 = vpack.c.b16 %v1377, %v1373
    %v1832 = vpack.c.b16 %v1378, %v1374
    %v1833 = vpack.c.b16 %v1379, %v1375
    %v1897 = vunpack.c.l.b16 %v1380
    %v1898 = vunpack.c.l.b16 %v1381
    %v1899 = vunpack.c.l.b16 %v1382
    %v1900 = vunpack.c.l.b16 %v1383
    %v1901 = vunpack.c.l.b16 %v1384
    %v1902 = vunpack.c.l.b16 %v1385
    %v1903 = vunpack.c.l.b16 %v1386
    %v1904 = vunpack.c.l.b16 %v1387
    %v1905 = vunpack.c.l.b16 %v1388
    %v1906 = vunpack.c.l.b16 %v1389
    %v1907 = vunpack.c.l.b16 %v1390
    %v1908 = vunpack.c.l.b16 %v1391
    %v1909 = vunpack.c.l.b16 %v1392
    %v1910 = vunpack.c.l.b16 %v1393
    %v1911 = vunpack.c.l.b16 %v1394
    %v1912 = vunpack.c.l.b16 %v1395
    %v1913 = vunpack.c.l.b16 %v1396
    %v1914 = vunpack.c.l.b16 %v1397
    %v1915 = vunpack.c.l.b16 %v1398
    %v1916 = vunpack.c.l.b16 %v1399
    %v1917 = vunpack.c.l.b16 %v1400
    %v1918 = vunpack.c.l.b16 %v1401
    %v1919 = vunpack.c.l.b16 %v1402
    %v1920 = vunpack.c.l.b16 %v1403
    %v1921 = vunpack.c.l.b16 %v1404
    %v1922 = vunpack.c.l.b16 %v1405
    %v1923 = vunpack.c.l.b16 %v1406
    %v1924 = vunpack.c.l.b16 %v1407
    %v1925 = vunpack.c.l.b16 %v1408
    %v1926 = vunpack.c.l.b16 %v1409
    %v1927 = vunpack.c.l.b16 %v1410
    %v1928 = vunpack.c.l.b16 %v1411
    %v1929 = vunpack.c.l.b16 %v1412
    %v1930 = vunpack.c.l.b16 %v1413
    %v1931 = vunpack.c.l.b16 %v1414
    %v1932 = vunpack.c.l.b16 %v1415
    %v1933 = vunpack.c.l.b16 %v1416
    %v1934 = vunpack.c.l.b16 %v1417
    %v1935 = vunpack.c.l.b16 %v1418
    %v1936 = vunpack.c.l.b16 %v1419
    %v1937 = vunpack.c.l.b16 %v1420
    %v1938 = vunpack.c.l.b16 %v1421
    %v1939 = vunpack.c.l.b16 %v1422
    %v1940 = vunpack.c.l.b16 %v1423
    %v1941 = vunpack.c.l.b16 %v1424
    %v1942 = vunpack.c.l.b16 %v1425
    %v1943 = vunpack.c.l.b16 %v1426
    %v1944 = vunpack.c.l.b16 %v1427
    %v1945 = vunpack.c.l.b16 %v1428
    %v1946 = vunpack.c.l.b16 %v1429
    %v1947 = vunpack.c.l.b16 %v1430
    %v1948 = vunpack.c.l.b16 %v1431
    %v1949 = vunpack.c.l.b16 %v1432
    %v1950 = vunpack.c.l.b16 %v1433
    %v1951 = vunpack.c.l.b16 %v1434
    %v1952 = vunpack.c.l.b16 %v1435
    %v1953 = vunpack.c.l.b16 %v1436
    %v1954 = vunpack.c.l.b16 %v1437
    %v1955 = vunpack.c.l.b16 %v1438
    %v1956 = vunpack.c.l.b16 %v1439
    %v1957 = vpack.c.b16 %v1898, %v1897
    %v1958 = vpack.c.b16 %v1900, %v1899
    %v1959 = vpack.c.b16 %v1902, %v1901
    %v1960 = vpack.c.b16 %v1904, %v1903
    %v1961 = vpack.c.b16 %v1906, %v1905
    %v1962 = vpack.c.b16 %v1908, %v1907
    %v1963 = vpack.c.b16 %v1910, %v1909
    %v1964 = vpack.c.b16 %v1912, %v1911
    %v1965 = vpack.c.b16 %v1914, %v1913
    %v1966 = vpack.c.b16 %v1916, %v1915
    %v1967 = vpack.c.b16 %v1918, %v1917
    %v1968 = vpack.c.b16 %v1920, %v1919
    %v1969 = vpack.c.b16 %v1922, %v1921
    %v1970 = vpack.c.b16 %v1924, %v1923
    %v1971 = vpack.c.b16 %v1926, %v1925
    %v1972 = vpack.c.b16 %v1928, %v1927
    %v1973 = vpack.c.b16 %v1930, %v1929
    %v1974 = vpack.c.b16 %v1932, %v1931
    %v1975 = vpack.c.b16 %v1934, %v1933
    %v1976 = vpack.c.b16 %v1936, %v1935
    %v1977 = vpack.c.b16 %v1938, %v1937
    %v1978 = vpack.c.b16 %v1940, %v1939
    %v1979 = vpack.c.b16 %v1942, %v1941
    %v1980 = vpack.c.b16 %v1944, %v1943
    %v1981 = vpack.c.b16 %v1946, %v1945
    %v1982 = vpack.c.b16 %v1948, %v1947
    %v1983 = vpack.c.b16 %v1950, %v1949
    %v1984 = vpack.c.b16 %v1952, %v1951
    %v1985 = vpack.c.b16 %v1954, %v1953
    %v1986 = vpack.c.b16 %v1956, %v1955
    %v2018 = vsel %vm702, %v1833, 0
    %2020 = vmatpush.bf16.msra.mxu0 %v1964
    %2021 = vmatpush.bf16.msra.mxu0 %v1963
    %2022 = vmatpush.bf16.msra.mxu0 %v1962
    %2023 = vmatpush.bf16.msra.mxu0 %v1961
    %2024 = vmatpush.bf16.msra.mxu0 %v1960
    %2025 = vmatpush.bf16.msra.mxu0 %v1959
    %2026 = vmatpush.bf16.msra.mxu0 %v1958
    %2027 = vmatpush.bf16.msra.mxu0 %v1957
    %2028 = vmatmul.bf16.gmra.mxu0 %v1830
    %v2029 = vpop.f32.mrf.mxu0
    %v2030 = vadd.f32 %v1826, %v2029
    %v2031 = vpop.f32.mrf.mxu0
    %v2032 = vadd.f32 %v1828, %v2031
    %2033 = vdwg.mxu0
    %2034 = vmatpush.bf16.msra.mxu0 %v1972
    %2035 = vmatpush.bf16.msra.mxu0 %v1971
    %2036 = vmatpush.bf16.msra.mxu0 %v1970
    %2037 = vmatpush.bf16.msra.mxu0 %v1969
    %2038 = vmatpush.bf16.msra.mxu0 %v1968
    %2039 = vmatpush.bf16.msra.mxu0 %v1967
    %2040 = vmatpush.bf16.msra.mxu0 %v1966
    %2041 = vmatpush.bf16.msra.mxu0 %v1965
    %2042 = vmatmul.bf16.gmra.mxu0 %v1831
    %v2043 = vpop.f32.mrf.mxu0
    %v2044 = vadd.f32 %v2030, %v2043
    %v2045 = vpop.f32.mrf.mxu0
    %v2046 = vadd.f32 %v2032, %v2045
    %2047 = vdwg.mxu0
    %2048 = vmatpush.bf16.msra.mxu0 %v1980
    %2049 = vmatpush.bf16.msra.mxu0 %v1979
    %2050 = vmatpush.bf16.msra.mxu0 %v1978
    %2051 = vmatpush.bf16.msra.mxu0 %v1977
    %2052 = vmatpush.bf16.msra.mxu0 %v1976
    %2053 = vmatpush.bf16.msra.mxu0 %v1975
    %2054 = vmatpush.bf16.msra.mxu0 %v1974
    %2055 = vmatpush.bf16.msra.mxu0 %v1973
    %2056 = vmatmul.bf16.gmra.mxu0 %v1832
    %v2057 = vpop.f32.mrf.mxu0
    %v2058 = vadd.f32 %v2044, %v2057
    %v2059 = vpop.f32.mrf.mxu0
    %v2060 = vadd.f32 %v2046, %v2059
    %2061 = vdwg.mxu0
    %2062 = vmatpush.bf16.msra.mxu0 0
    %2063 = vmatpush.bf16.msra.mxu0 0
    %2064 = vmatpush.bf16.msra.mxu0 %v1986
    %2065 = vmatpush.bf16.msra.mxu0 %v1985
    %2066 = vmatpush.bf16.msra.mxu0 %v1984
    %2067 = vmatpush.bf16.msra.mxu0 %v1983
    %2068 = vmatpush.bf16.msra.mxu0 %v1982
    %2069 = vmatpush.bf16.msra.mxu0 %v1981
    %2070 = vmatmul.bf16.gmra.mxu0 %v2018
    %v2071 = vpop.f32.mrf.mxu0
    %v2072 = vadd.f32 %v2058, %v2071
    %v2073 = vpop.f32.mrf.mxu0
    %v2074 = vadd.f32 %v2060, %v2073
    %2075 = vdwg.mxu0
    %vm2076 = vcmask 1042432
    %vm2077 = vcmask 1046532
    %vm2078 = vmor %vm2076, %vm2077
    %v2079 = vrot.slane %v1448, 5
    %v2080 = vrot.slane %v2079, 4
    %v2081 = vrot.slane %v1450, 5
    %v2082 = vsel %vm2078, %v2080, %v2081
    %v2083 = vrot.slane %v1449, 5
    %v2084 = vrot.slane %v2083, 4
    %v2085 = vrot.slane %v1451, 5
    %v2086 = vsel %vm2078, %v2084, %v2085
    %v2087 = vrot.slane %v1452, 5
    %v2088 = vrot.slane %v2087, 4
    %v2089 = vrot.slane %v1454, 5
    %v2090 = vsel %vm2078, %v2088, %v2089
    %v2091 = vrot.slane %v1453, 5
    %v2092 = vrot.slane %v2091, 4
    %v2093 = vrot.slane %v1455, 5
    %v2094 = vsel %vm2078, %v2092, %v2093
    %s2095 = scalar_lea.vmem [#allocation2], 480
    %v2096 = vld [vmem:[%s2095] sm:$0xf]
    %v2097 = vld [vmem:[%s2095 + $0x4] sm:$0xf]
    %v2098 = vld [vmem:[%s2095 + $0x8] sm:$0xf]
    %v2099 = vld [vmem:[%s2095 + $0xc] sm:$0xf]
    %v2100 = vld [vmem:[%s2095 + $0x10] sm:$0xf]
    %v2101 = vld [vmem:[%s2095 + $0x14] sm:$0xf]
    %v2102 = vld [vmem:[%s2095 + $0x18] sm:$0xf]
    %v2103 = vld [vmem:[%s2095 + $0x1c] sm:$0xf]
    %v2104 = vld [vmem:[%s2095 + $0x20] sm:$0xf]
    %v2105 = vld [vmem:[%s2095 + $0x24] sm:$0xf]
    %v2106 = vld [vmem:[%s2095 + $0x28] sm:$0xf]
    %v2107 = vld [vmem:[%s2095 + $0x2c] sm:$0xf]
    %v2108 = vld [vmem:[%s2095 + $0x30] sm:$0xf]
    %v2109 = vld [vmem:[%s2095 + $0x34] sm:$0xf]
    %v2110 = vld [vmem:[%s2095 + $0x38] sm:$0xf]
    %v2111 = vld [vmem:[%s2095 + $0x3c] sm:$0xf]
    %v2112 = vld [vmem:[%s2095 + $0x40] sm:$0xf]
    %v2113 = vld [vmem:[%s2095 + $0x44] sm:$0xf]
    %v2114 = vld [vmem:[%s2095 + $0x48] sm:$0xf]
    %v2115 = vld [vmem:[%s2095 + $0x4c] sm:$0xf]
    %v2116 = vld [vmem:[%s2095 + $0x50] sm:$0xf]
    %v2117 = vld [vmem:[%s2095 + $0x54] sm:$0xf]
    %v2118 = vld [vmem:[%s2095 + $0x58] sm:$0xf]
    %v2119 = vld [vmem:[%s2095 + $0x5c] sm:$0xf]
    %v2120 = vld [vmem:[%s2095 + $0x60] sm:$0xf]
    %v2121 = vld [vmem:[%s2095 + $0x64] sm:$0xf]
    %v2122 = vld [vmem:[%s2095 + $0x68] sm:$0xf]
    %v2123 = vld [vmem:[%s2095 + $0x6c] sm:$0xf]
    %v2124 = vld [vmem:[%s2095 + $0x70] sm:$0xf]
    %v2125 = vld [vmem:[%s2095 + $0x74] sm:$0xf]
    %v2126 = vld [vmem:[%s2095 + $0x78] sm:$0xf]
    %v2127 = vld [vmem:[%s2095 + $0x7c] sm:$0xf]
    %v2128 = vld [vmem:[%s2095 + $0x80] sm:$0xf]
    %v2129 = vld [vmem:[%s2095 + $0x84] sm:$0xf]
    %v2130 = vld [vmem:[%s2095 + $0x88] sm:$0xf]
    %v2131 = vld [vmem:[%s2095 + $0x8c] sm:$0xf]
    %v2132 = vld [vmem:[%s2095 + $0x90] sm:$0xf]
    %v2133 = vld [vmem:[%s2095 + $0x94] sm:$0xf]
    %v2134 = vld [vmem:[%s2095 + $0x98] sm:$0xf]
    %v2135 = vld [vmem:[%s2095 + $0x9c] sm:$0xf]
    %v2136 = vld [vmem:[%s2095 + $0xa0] sm:$0xf]
    %v2137 = vld [vmem:[%s2095 + $0xa4] sm:$0xf]
    %v2138 = vld [vmem:[%s2095 + $0xa8] sm:$0xf]
    %v2139 = vld [vmem:[%s2095 + $0xac] sm:$0xf]
    %v2140 = vld [vmem:[%s2095 + $0xb0] sm:$0xf]
    %v2141 = vld [vmem:[%s2095 + $0xb4] sm:$0xf]
    %v2142 = vld [vmem:[%s2095 + $0xb8] sm:$0xf]
    %v2143 = vld [vmem:[%s2095 + $0xbc] sm:$0xf]
    %v2144 = vld [vmem:[%s2095 + $0xc0] sm:$0xf]
    %v2145 = vld [vmem:[%s2095 + $0xc4] sm:$0xf]
    %v2146 = vld [vmem:[%s2095 + $0xc8] sm:$0xf]
    %v2147 = vld [vmem:[%s2095 + $0xcc] sm:$0xf]
    %v2148 = vld [vmem:[%s2095 + $0xd0] sm:$0xf]
    %v2149 = vld [vmem:[%s2095 + $0xd4] sm:$0xf]
    %v2150 = vld [vmem:[%s2095 + $0xd8] sm:$0xf]
    %v2151 = vld [vmem:[%s2095 + $0xdc] sm:$0xf]
    %v2152 = vld [vmem:[%s2095 + $0xe0] sm:$0xf]
    %v2153 = vld [vmem:[%s2095 + $0xe4] sm:$0xf]
    %v2154 = vld [vmem:[%s2095 + $0xe8] sm:$0xf]
    %v2155 = vld [vmem:[%s2095 + $0xec] sm:$0xf]
    %v2156 = vunpack.c.l.b16 %v2082
    %v2157 = vunpack.c.h.b16 %v2082
    %v2158 = vunpack.c.l.b16 %v2086
    %v2159 = vunpack.c.h.b16 %v2086
    %v2160 = vunpack.c.l.b16 %v2090
    %v2161 = vunpack.c.h.b16 %v2090
    %v2162 = vunpack.c.l.b16 %v2094
    %v2163 = vunpack.c.h.b16 %v2094
    %v2164 = vpack.c.b16 %v2160, %v2156
    %v2165 = vpack.c.b16 %v2161, %v2157
    %v2166 = vpack.c.b16 %v2162, %v2158
    %v2167 = vpack.c.b16 %v2163, %v2159
    %v2231 = vunpack.c.l.b16 %v2096
    %v2232 = vunpack.c.l.b16 %v2097
    %v2233 = vunpack.c.l.b16 %v2098
    %v2234 = vunpack.c.l.b16 %v2099
    %v2235 = vunpack.c.l.b16 %v2100
    %v2236 = vunpack.c.l.b16 %v2101
    %v2237 = vunpack.c.l.b16 %v2102
    %v2238 = vunpack.c.l.b16 %v2103
    %v2239 = vunpack.c.l.b16 %v2104
    %v2240 = vunpack.c.l.b16 %v2105
    %v2241 = vunpack.c.l.b16 %v2106
    %v2242 = vunpack.c.l.b16 %v2107
    %v2243 = vunpack.c.l.b16 %v2108
    %v2244 = vunpack.c.l.b16 %v2109
    %v2245 = vunpack.c.l.b16 %v2110
    %v2246 = vunpack.c.l.b16 %v2111
    %v2247 = vunpack.c.l.b16 %v2112
    %v2248 = vunpack.c.l.b16 %v2113
    %v2249 = vunpack.c.l.b16 %v2114
    %v2250 = vunpack.c.l.b16 %v2115
    %v2251 = vunpack.c.l.b16 %v2116
    %v2252 = vunpack.c.l.b16 %v2117
    %v2253 = vunpack.c.l.b16 %v2118
    %v2254 = vunpack.c.l.b16 %v2119
    %v2255 = vunpack.c.l.b16 %v2120
    %v2256 = vunpack.c.l.b16 %v2121
    %v2257 = vunpack.c.l.b16 %v2122
    %v2258 = vunpack.c.l.b16 %v2123
    %v2259 = vunpack.c.l.b16 %v2124
    %v2260 = vunpack.c.l.b16 %v2125
    %v2261 = vunpack.c.l.b16 %v2126
    %v2262 = vunpack.c.l.b16 %v2127
    %v2263 = vunpack.c.l.b16 %v2128
    %v2264 = vunpack.c.l.b16 %v2129
    %v2265 = vunpack.c.l.b16 %v2130
    %v2266 = vunpack.c.l.b16 %v2131
    %v2267 = vunpack.c.l.b16 %v2132
    %v2268 = vunpack.c.l.b16 %v2133
    %v2269 = vunpack.c.l.b16 %v2134
    %v2270 = vunpack.c.l.b16 %v2135
    %v2271 = vunpack.c.l.b16 %v2136
    %v2272 = vunpack.c.l.b16 %v2137
    %v2273 = vunpack.c.l.b16 %v2138
    %v2274 = vunpack.c.l.b16 %v2139
    %v2275 = vunpack.c.l.b16 %v2140
    %v2276 = vunpack.c.l.b16 %v2141
    %v2277 = vunpack.c.l.b16 %v2142
    %v2278 = vunpack.c.l.b16 %v2143
    %v2279 = vunpack.c.l.b16 %v2144
    %v2280 = vunpack.c.l.b16 %v2145
    %v2281 = vunpack.c.l.b16 %v2146
    %v2282 = vunpack.c.l.b16 %v2147
    %v2283 = vunpack.c.l.b16 %v2148
    %v2284 = vunpack.c.l.b16 %v2149
    %v2285 = vunpack.c.l.b16 %v2150
    %v2286 = vunpack.c.l.b16 %v2151
    %v2287 = vunpack.c.l.b16 %v2152
    %v2288 = vunpack.c.l.b16 %v2153
    %v2289 = vunpack.c.l.b16 %v2154
    %v2290 = vunpack.c.l.b16 %v2155
    %v2291 = vpack.c.b16 %v2232, %v2231
    %v2292 = vpack.c.b16 %v2234, %v2233
    %v2293 = vpack.c.b16 %v2236, %v2235
    %v2294 = vpack.c.b16 %v2238, %v2237
    %v2295 = vpack.c.b16 %v2240, %v2239
    %v2296 = vpack.c.b16 %v2242, %v2241
    %v2297 = vpack.c.b16 %v2244, %v2243
    %v2298 = vpack.c.b16 %v2246, %v2245
    %v2299 = vpack.c.b16 %v2248, %v2247
    %v2300 = vpack.c.b16 %v2250, %v2249
    %v2301 = vpack.c.b16 %v2252, %v2251
    %v2302 = vpack.c.b16 %v2254, %v2253
    %v2303 = vpack.c.b16 %v2256, %v2255
    %v2304 = vpack.c.b16 %v2258, %v2257
    %v2305 = vpack.c.b16 %v2260, %v2259
    %v2306 = vpack.c.b16 %v2262, %v2261
    %v2307 = vpack.c.b16 %v2264, %v2263
    %v2308 = vpack.c.b16 %v2266, %v2265
    %v2309 = vpack.c.b16 %v2268, %v2267
    %v2310 = vpack.c.b16 %v2270, %v2269
    %v2311 = vpack.c.b16 %v2272, %v2271
    %v2312 = vpack.c.b16 %v2274, %v2273
    %v2313 = vpack.c.b16 %v2276, %v2275
    %v2314 = vpack.c.b16 %v2278, %v2277
    %v2315 = vpack.c.b16 %v2280, %v2279
    %v2316 = vpack.c.b16 %v2282, %v2281
    %v2317 = vpack.c.b16 %v2284, %v2283
    %v2318 = vpack.c.b16 %v2286, %v2285
    %v2319 = vpack.c.b16 %v2288, %v2287
    %v2320 = vpack.c.b16 %v2290, %v2289
    %v2352 = vsel %vm702, %v2167, 0
    %2354 = vmatpush.bf16.msra.mxu0 %v2298
    %2355 = vmatpush.bf16.msra.mxu0 %v2297
    %2356 = vmatpush.bf16.msra.mxu0 %v2296
    %2357 = vmatpush.bf16.msra.mxu0 %v2295
    %2358 = vmatpush.bf16.msra.mxu0 %v2294
    %2359 = vmatpush.bf16.msra.mxu0 %v2293
    %2360 = vmatpush.bf16.msra.mxu0 %v2292
    %2361 = vmatpush.bf16.msra.mxu0 %v2291
    %2362 = vmatmul.bf16.gmra.mxu0 %v2164
    %v2363 = vpop.f32.mrf.mxu0
    %v2364 = vadd.f32 0.0, %v2363
    %v2365 = vpop.f32.mrf.mxu0
    %v2366 = vadd.f32 0.0, %v2365
    %2367 = vdwg.mxu0
    %2368 = vmatpush.bf16.msra.mxu0 %v2306
    %2369 = vmatpush.bf16.msra.mxu0 %v2305
    %2370 = vmatpush.bf16.msra.mxu0 %v2304
    %2371 = vmatpush.bf16.msra.mxu0 %v2303
    %2372 = vmatpush.bf16.msra.mxu0 %v2302
    %2373 = vmatpush.bf16.msra.mxu0 %v2301
    %2374 = vmatpush.bf16.msra.mxu0 %v2300
    %2375 = vmatpush.bf16.msra.mxu0 %v2299
    %2376 = vmatmul.bf16.gmra.mxu0 %v2165
    %v2377 = vpop.f32.mrf.mxu0
    %v2378 = vadd.f32 %v2364, %v2377
    %v2379 = vpop.f32.mrf.mxu0
    %v2380 = vadd.f32 %v2366, %v2379
    %2381 = vdwg.mxu0
    %2382 = vmatpush.bf16.msra.mxu0 %v2314
    %2383 = vmatpush.bf16.msra.mxu0 %v2313
    %2384 = vmatpush.bf16.msra.mxu0 %v2312
    %2385 = vmatpush.bf16.msra.mxu0 %v2311
    %2386 = vmatpush.bf16.msra.mxu0 %v2310
    %2387 = vmatpush.bf16.msra.mxu0 %v2309
    %2388 = vmatpush.bf16.msra.mxu0 %v2308
    %2389 = vmatpush.bf16.msra.mxu0 %v2307
    %2390 = vmatmul.bf16.gmra.mxu0 %v2166
    %v2391 = vpop.f32.mrf.mxu0
    %v2392 = vadd.f32 %v2378, %v2391
    %v2393 = vpop.f32.mrf.mxu0
    %v2394 = vadd.f32 %v2380, %v2393
    %2395 = vdwg.mxu0
    %2396 = vmatpush.bf16.msra.mxu0 0
    %2397 = vmatpush.bf16.msra.mxu0 0
    %2398 = vmatpush.bf16.msra.mxu0 %v2320
    %2399 = vmatpush.bf16.msra.mxu0 %v2319
    %2400 = vmatpush.bf16.msra.mxu0 %v2318
    %2401 = vmatpush.bf16.msra.mxu0 %v2317
    %2402 = vmatpush.bf16.msra.mxu0 %v2316
    %2403 = vmatpush.bf16.msra.mxu0 %v2315
    %2404 = vmatmul.bf16.gmra.mxu0 %v2352
    %v2405 = vpop.f32.mrf.mxu0
    %v2406 = vadd.f32 %v2392, %v2405
    %v2407 = vpop.f32.mrf.mxu0
    %v2408 = vadd.f32 %v2394, %v2407
    %2409 = vdwg.mxu0
    %v2410 = vadd.f32 %v2072, %v2406
    %v2411 = vadd.f32 %v2074, %v2408
    %v2414 = vrot.slane %v2410, 2
    %v2415 = vrot.slane %v2410, 4
    %v2416 = vrot.slane %v2410, 6
    %v2417 = vrot.slane %v2411, 2
    %v2418 = vrot.slane %v2411, 4
    %v2419 = vrot.slane %v2411, 6
    %v2426 = vrot.slane %v2410, 7
    %v2427 = vrot.slane %v2426, 2
    %v2428 = vrot.slane %v2414, 7
    %v2429 = vrot.slane %v2428, 2
    %v2430 = vrot.slane %v2415, 7
    %v2431 = vrot.slane %v2430, 2
    %v2432 = vrot.slane %v2416, 7
    %v2433 = vrot.slane %v2432, 2
    %v2434 = vrot.slane %v2411, 7
    %v2435 = vrot.slane %v2434, 2
    %v2436 = vrot.slane %v2417, 7
    %v2437 = vrot.slane %v2436, 2
    %v2438 = vrot.slane %v2418, 7
    %v2439 = vrot.slane %v2438, 2
    %v2440 = vrot.slane %v2419, 7
    %v2441 = vrot.slane %v2440, 2
    %v2450 = vmax.f32 %v2410, %v2427
    %v2451 = vmax.f32 %v2414, %v2429
    %v2452 = vmax.f32 %v2415, %v2431
    %v2453 = vmax.f32 %v2416, %v2433
    %v2454 = vmax.f32 %v2411, %v2435
    %v2455 = vmax.f32 %v2417, %v2437
    %v2456 = vmax.f32 %v2418, %v2439
    %v2457 = vmax.f32 %v2419, %v2441
    %2466 = vrot.lane.b32.xlu0 %v2450, 112
    %v2467 = vpop.permute.xlu0 %2466
    %2468 = vrot.lane.b32.xlu0 %v2451, 112
    %v2469 = vpop.permute.xlu0 %2468
    %2470 = vrot.lane.b32.xlu0 %v2452, 112
    %v2471 = vpop.permute.xlu0 %2470
    %2472 = vrot.lane.b32.xlu0 %v2453, 112
    %v2473 = vpop.permute.xlu0 %2472
    %2474 = vrot.lane.b32.xlu0 %v2454, 112
    %v2475 = vpop.permute.xlu0 %2474
    %2476 = vrot.lane.b32.xlu0 %v2455, 112
    %v2477 = vpop.permute.xlu0 %2476
    %2478 = vrot.lane.b32.xlu0 %v2456, 112
    %v2479 = vpop.permute.xlu0 %2478
    %2480 = vrot.lane.b32.xlu0 %v2457, 112
    %v2481 = vpop.permute.xlu0 %2480
    %v2490 = vmax.f32 %v2450, %v2467
    %v2491 = vmax.f32 %v2451, %v2469
    %v2492 = vmax.f32 %v2452, %v2471
    %v2493 = vmax.f32 %v2453, %v2473
    %v2494 = vmax.f32 %v2454, %v2475
    %v2495 = vmax.f32 %v2455, %v2477
    %v2496 = vmax.f32 %v2456, %v2479
    %v2497 = vmax.f32 %v2457, %v2481
    %v2498 = vld [vmem:[%s4] sm:$0x1]
    %v2500 = vperm.slane %v2498, 0
    %v2501 = vrot.slane %v2500, 2
    %v2502 = vrot.slane %v2500, 1
    %v2503 = vrot.slane %v2501, 1
    %v2508 = vadd.f32 %v2490, %v2500
    %v2509 = vadd.f32 %v2491, %v2502
    %v2510 = vadd.f32 %v2492, %v2501
    %v2511 = vadd.f32 %v2493, %v2503
    %v2512 = vadd.f32 %v2494, %v2500
    %v2513 = vadd.f32 %v2495, %v2502
    %v2514 = vadd.f32 %v2496, %v2501
    %v2515 = vadd.f32 %v2497, %v2503
    %v2516 = vtanh.pop %v2508
    %v2517 = vtanh.pop %v2509
    %v2518 = vtanh.pop %v2510
    %v2519 = vtanh.pop %v2511
    %v2520 = vtanh.pop %v2512
    %v2521 = vtanh.pop %v2513
    %v2522 = vtanh.pop %v2514
    %v2523 = vtanh.pop %v2515
    %v2524 = vld [vmem:[%s5] sm:$0xff]
    %v2525 = vld [vmem:[%s5 + $0x8] sm:$0xff]
    %v2526 = vld [vmem:[%s5 + $0x10] sm:$0xff]
    %v2527 = vld [vmem:[%s5 + $0x18] sm:$0xff]
    %v2528 = vld [vmem:[%s5 + $0x20] sm:$0xff]
    %v2529 = vld [vmem:[%s5 + $0x28] sm:$0xff]
    %v2530 = vld [vmem:[%s5 + $0x30] sm:$0xff]
    %v2531 = vld [vmem:[%s5 + $0x38] sm:$0xff]
    %v2532 = vld [vmem:[%s5 + $0x40] sm:$0xff]
    %v2533 = vld [vmem:[%s5 + $0x48] sm:$0xff]
    %v2534 = vld [vmem:[%s5 + $0x50] sm:$0xff]
    %v2535 = vld [vmem:[%s5 + $0x58] sm:$0xff]
    %v2536 = vld [vmem:[%s5 + $0x60] sm:$0xff]
    %v2537 = vld [vmem:[%s5 + $0x68] sm:$0xff]
    %s2538 = scalar_lea.vmem %s5, 112
    %v2539 = vld [vmem:[%s2538] sm:$0xff]
    %v2540 = vld [vmem:[%s2538 + $0x8] sm:$0xff]
    %v2541 = vld [vmem:[%s2538 + $0x10] sm:$0xff]
    %v2542 = vld [vmem:[%s2538 + $0x18] sm:$0xff]
    %v2543 = vld [vmem:[%s2538 + $0x20] sm:$0xff]
    %v2544 = vld [vmem:[%s2538 + $0x28] sm:$0xff]
    %v2545 = vld [vmem:[%s2538 + $0x30] sm:$0xff]
    %v2546 = vld [vmem:[%s2538 + $0x38] sm:$0xff]
    %v2547 = vld [vmem:[%s2538 + $0x40] sm:$0xff]
    %v2548 = vld [vmem:[%s2538 + $0x48] sm:$0xff]
    %v2549 = vld [vmem:[%s2538 + $0x50] sm:$0xff]
    %v2550 = vld [vmem:[%s2538 + $0x58] sm:$0xff]
    %v2551 = vld [vmem:[%s2538 + $0x60] sm:$0xff]
    %v2552 = vld [vmem:[%s2538 + $0x68] sm:$0xff]
    %v2555 = vperm.slane %v2517, 0
    %v2556 = vperm.slane %v2521, 0
    %vm2557 = vcmask 1041409
    %v2558 = vsel %vm2557, %v2556, %v2555
    %vm2559 = vcmask 916480
    %v2560 = vsel %vm2559, %v2558, 0
    %2562 = vmatpush.msra.mxu0 0.0
    %2563 = vmatpush.msra.mxu0 0.0
    %2564 = vmatpush.msra.mxu0 %v2552
    %2565 = vmatpush.msra.mxu0 %v2551
    %2566 = vmatpush.msra.mxu0 %v2550
    %2567 = vmatpush.msra.mxu0 %v2549
    %2568 = vmatpush.msra.mxu0 %v2548
    %2569 = vmatpush.msra.mxu0 %v2547
    %2570 = vmatpush.msra.mxu0 %v2546
    %2571 = vmatpush.msra.mxu0 %v2545
    %2572 = vmatpush.msra.mxu0 %v2544
    %2573 = vmatpush.msra.mxu0 %v2543
    %2574 = vmatpush.msra.mxu0 %v2542
    %2575 = vmatpush.msra.mxu0 %v2541
    %2576 = vmatpush.msra.mxu0 %v2540
    %2577 = vmatpush.msra.mxu0 %v2539
    %2578 = vmatmul.f32.gmra.mxu0 %v2560
    %v2579 = vpop.f32.mrf.mxu0
    %v2580 = vadd.f32 0.0, %v2579
    %2581 = vdwg.mxu0
    %v2584 = vperm.slane %v2516, 0
    %v2585 = vperm.slane %v2520, 0
    %v2586 = vsel %vm2557, %v2585, %v2584
    %v2587 = vsel %vm2559, %v2586, 0
    %2589 = vmatpush.msra.mxu0 0.0
    %2590 = vmatpush.msra.mxu0 0.0
    %2591 = vmatpush.msra.mxu0 %v2537
    %2592 = vmatpush.msra.mxu0 %v2536
    %2593 = vmatpush.msra.mxu0 %v2535
    %2594 = vmatpush.msra.mxu0 %v2534
    %2595 = vmatpush.msra.mxu0 %v2533
    %2596 = vmatpush.msra.mxu0 %v2532
    %2597 = vmatpush.msra.mxu0 %v2531
    %2598 = vmatpush.msra.mxu0 %v2530
    %2599 = vmatpush.msra.mxu0 %v2529
    %2600 = vmatpush.msra.mxu0 %v2528
    %2601 = vmatpush.msra.mxu0 %v2527
    %2602 = vmatpush.msra.mxu0 %v2526
    %2603 = vmatpush.msra.mxu0 %v2525
    %2604 = vmatpush.msra.mxu0 %v2524
    %2605 = vmatmul.f32.gmra.mxu0 %v2587
    %v2606 = vpop.f32.mrf.mxu0
    %v2607 = vadd.f32 %v2580, %v2606
    %2608 = vdwg.mxu0
    %s2609 = scalar_lea.vmem %s5, 224
    %v2610 = vld [vmem:[%s2609] sm:$0xff]
    %v2611 = vld [vmem:[%s2609 + $0x8] sm:$0xff]
    %v2612 = vld [vmem:[%s2609 + $0x10] sm:$0xff]
    %v2613 = vld [vmem:[%s2609 + $0x18] sm:$0xff]
    %v2614 = vld [vmem:[%s2609 + $0x20] sm:$0xff]
    %v2615 = vld [vmem:[%s2609 + $0x28] sm:$0xff]
    %v2616 = vld [vmem:[%s2609 + $0x30] sm:$0xff]
    %v2617 = vld [vmem:[%s2609 + $0x38] sm:$0xff]
    %v2618 = vld [vmem:[%s2609 + $0x40] sm:$0xff]
    %v2619 = vld [vmem:[%s2609 + $0x48] sm:$0xff]
    %v2620 = vld [vmem:[%s2609 + $0x50] sm:$0xff]
    %v2621 = vld [vmem:[%s2609 + $0x58] sm:$0xff]
    %v2622 = vld [vmem:[%s2609 + $0x60] sm:$0xff]
    %v2623 = vld [vmem:[%s2609 + $0x68] sm:$0xff]
    %v2626 = vperm.slane %v2518, 0
    %v2627 = vperm.slane %v2522, 0
    %v2628 = vsel %vm2557, %v2627, %v2626
    %v2629 = vsel %vm2559, %v2628, 0
    %2631 = vmatpush.msra.mxu0 0.0
    %2632 = vmatpush.msra.mxu0 0.0
    %2633 = vmatpush.msra.mxu0 %v2623
    %2634 = vmatpush.msra.mxu0 %v2622
    %2635 = vmatpush.msra.mxu0 %v2621
    %2636 = vmatpush.msra.mxu0 %v2620
    %2637 = vmatpush.msra.mxu0 %v2619
    %2638 = vmatpush.msra.mxu0 %v2618
    %2639 = vmatpush.msra.mxu0 %v2617
    %2640 = vmatpush.msra.mxu0 %v2616
    %2641 = vmatpush.msra.mxu0 %v2615
    %2642 = vmatpush.msra.mxu0 %v2614
    %2643 = vmatpush.msra.mxu0 %v2613
    %2644 = vmatpush.msra.mxu0 %v2612
    %2645 = vmatpush.msra.mxu0 %v2611
    %2646 = vmatpush.msra.mxu0 %v2610
    %2647 = vmatmul.f32.gmra.mxu0 %v2629
    %v2648 = vpop.f32.mrf.mxu0
    %v2649 = vadd.f32 0.0, %v2648
    %2650 = vdwg.mxu0
    %v2651 = vadd.f32 %v2607, %v2649
    %s2652 = scalar_lea.vmem %s5, 336
    %v2653 = vld [vmem:[%s2652] sm:$0xff]
    %v2654 = vld [vmem:[%s2652 + $0x8] sm:$0xff]
    %v2655 = vld [vmem:[%s2652 + $0x10] sm:$0xff]
    %v2656 = vld [vmem:[%s2652 + $0x18] sm:$0xff]
    %v2657 = vld [vmem:[%s2652 + $0x20] sm:$0xff]
    %v2658 = vld [vmem:[%s2652 + $0x28] sm:$0xff]
    %v2659 = vld [vmem:[%s2652 + $0x30] sm:$0xff]
    %v2660 = vld [vmem:[%s2652 + $0x38] sm:$0xff]
    %v2661 = vld [vmem:[%s2652 + $0x40] sm:$0xff]
    %v2662 = vld [vmem:[%s2652 + $0x48] sm:$0xff]
    %v2663 = vld [vmem:[%s2652 + $0x50] sm:$0xff]
    %v2664 = vld [vmem:[%s2652 + $0x58] sm:$0xff]
    %v2665 = vld [vmem:[%s2652 + $0x60] sm:$0xff]
    %v2666 = vld [vmem:[%s2652 + $0x68] sm:$0xff]
    %v2669 = vperm.slane %v2519, 0
    %v2670 = vperm.slane %v2523, 0
    %v2671 = vsel %vm2557, %v2670, %v2669
    %v2672 = vsel %vm2559, %v2671, 0
    %2674 = vmatpush.msra.mxu0 0.0
    %2675 = vmatpush.msra.mxu0 0.0
    %2676 = vmatpush.msra.mxu0 %v2666
    %2677 = vmatpush.msra.mxu0 %v2665
    %2678 = vmatpush.msra.mxu0 %v2664
    %2679 = vmatpush.msra.mxu0 %v2663
    %2680 = vmatpush.msra.mxu0 %v2662
    %2681 = vmatpush.msra.mxu0 %v2661
    %2682 = vmatpush.msra.mxu0 %v2660
    %2683 = vmatpush.msra.mxu0 %v2659
    %2684 = vmatpush.msra.mxu0 %v2658
    %2685 = vmatpush.msra.mxu0 %v2657
    %2686 = vmatpush.msra.mxu0 %v2656
    %2687 = vmatpush.msra.mxu0 %v2655
    %2688 = vmatpush.msra.mxu0 %v2654
    %2689 = vmatpush.msra.mxu0 %v2653
    %2690 = vmatmul.f32.gmra.mxu0 %v2672
    %v2691 = vpop.f32.mrf.mxu0
    %v2692 = vadd.f32 0.0, %v2691
    %2693 = vdwg.mxu0
    %v2694 = vadd.f32 %v2651, %v2692
    %v2695 = vld [vmem:[%s6] sm:$0x1]
    %v2697 = vperm.slane %v2695, 0
    %v2699 = vadd.f32 %v2694, %v2697
    %v2700 = vtanh.pop %v2699
    %v2701 = vld [vmem:[%s7] sm:$0xff]
    %v2702 = vld [vmem:[%s7 + $0x8] sm:$0xff]
    %v2703 = vld [vmem:[%s7 + $0x10] sm:$0xff]
    %v2704 = vld [vmem:[%s7 + $0x18] sm:$0xff]
    %v2705 = vld [vmem:[%s8] sm:$0x1]
    %v2707 = vperm.slane %v2705, 0
    %vm2709 = vcmask 261120
    %v2711 = vsel %vm2709, %v2700, 0
    %2713 = vmatpush.msra.mxu0 0.0
    %2714 = vmatpush.msra.mxu0 0.0
    %2715 = vmatpush.msra.mxu0 0.0
    %2716 = vmatpush.msra.mxu0 0.0
    %2717 = vmatpush.msra.mxu0 0.0
    %2718 = vmatpush.msra.mxu0 0.0
    %2719 = vmatpush.msra.mxu0 0.0
    %2720 = vmatpush.msra.mxu0 0.0
    %2721 = vmatpush.msra.mxu0 0.0
    %2722 = vmatpush.msra.mxu0 0.0
    %2723 = vmatpush.msra.mxu0 0.0
    %2724 = vmatpush.msra.mxu0 0.0
    %2725 = vmatpush.msra.mxu0 %v2704
    %2726 = vmatpush.msra.mxu0 %v2703
    %2727 = vmatpush.msra.mxu0 %v2702
    %2728 = vmatpush.msra.mxu0 %v2701
    %2729 = vmatmul.f32.gmra.mxu0 %v2711
    %v2730 = vpop.f32.mrf.mxu0
    %v2731 = vadd.f32 %v2707, %v2730
    %2732 = vdwg.mxu0
    %2733 = vst [vmem:[#allocation5] sm:$0x3] %v2731
    // Predicated region
    $region42: #{netwidth_forward.1} parent=1 // pred_check
      _
    $region43: #{netwidth_forward.1} parent=1 // pred_check_branch
      %2735 = sbr.rel (0) target = $region45
    $region44: #{netwidth_forward.1} parent=1 // pred_region
      %2737 = vsyncadd [#allocation4], 0
      %s2739 = sshll.u32 [#allocation5], 4
      %s2740 = int_to_ptr.vmem [resolvable:$true] %s2739
      %s2741 = sshll.u32 %s9, 4
      %s2742 = int_to_ptr.hbm [resolvable:$true] %s2741
      %2744 = dma.vmem_to_hbm [thread:$0]  %s2740, 32, %s2742, [#allocation4]
    $region45: #{netwidth_forward.1} parent=1 // pred_fallthru
      _
    // Predicated region
    $region46: #{netwidth_forward.1} parent=1 // pred_check
      _
    $region47: #{netwidth_forward.1} parent=1 // pred_check_branch
      %2746 = sbr.rel (0) target = $region49
    $region48: #{netwidth_forward.1} parent=1 // pred_region
      %2748 = dma.done [#allocation4], 32
    $region49: #{netwidth_forward.1} parent=1 // pred_fallthru
      _
    %2749 = vsyncpa [#allocation3], 1
    %2750 = vsyncpa [#allocation4], 1

</llo_original>
